<compile_context>
chip_gen: v5e
topology: v5e:2x2
jax: 0.10.0
libtpu: 0.0.40
codegen_flags: <defaults>
</compile_context>

<pallas_src>
import math
import jax
import jax.numpy as jnp
from jax.experimental import pallas as pl
from jax.experimental.pallas import tpu as pltpu


# ---------------------------------------------------------------------------
# Single fused Pallas kernel for the whole forward pass.
# ---------------------------------------------------------------------------
def fused_de_cov_kernel(x_ref,
                        wu1_ref, bu1_ref,
                        wr3a_ref, br3a_ref, wr3b_ref, br3b_ref,
                        wu2_ref, bu2_ref,
                        wr2a_ref, br2a_ref, wr2b_ref, br2b_ref,
                        wu3_ref, bu3_ref,
                        o_ref):
    B = x_ref.shape[0]

    def silu(v):
        # numerically-stable sigmoid: exp argument is always <= 0
        e = jnp.exp(-jnp.abs(v))
        r = 1.0 / (1.0 + e)
        sig = jnp.where(v >= 0, r, e * r)
        return v * sig

    def pad_fold(xf, L, pad):
        # (C, B*L) -> (C, B*(L + 2*pad)); zero-pad each batch segment.
        C = xf.shape[0]
        z = jnp.zeros((C, pad), jnp.float32)
        segs = []
        for b in range(B):
            segs += [z, xf[:, b * L:(b + 1) * L], z]
        return jnp.concatenate(segs, axis=1)

    def im2col(xp, Lp, K, L_out):
        # (C, B*Lp) -> (K*C, B*L_out); rows tap-major, columns batch-major.
        cols = []
        for b in range(B):
            seg = xp[:, b * Lp:(b + 1) * Lp]
            cols.append(jnp.concatenate(
                [seg[:, j:j + L_out] for j in range(K)], axis=0))
        return jnp.concatenate(cols, axis=1)

    def conv_silu(xf, L, w, bias, K, pad):
        # stride-1 correlation + bias + SiLU: ONE MXU dot for all taps & batch.
        L_out = L + 2 * pad - (K - 1)
        cols = im2col(pad_fold(xf, L, pad), L + 2 * pad, K, L_out)
        y = jnp.dot(w, cols, preferred_element_type=jnp.float32) + bias
        return silu(y), L_out

    def spread(n, phase):
        # (n, 2n) 0/1 selection matrix: input column j -> output column 2j+phase
        r = jax.lax.broadcasted_iota(jnp.int32, (n, 2 * n), 0)
        c = jax.lax.broadcasted_iota(jnp.int32, (n, 2 * n), 1)
        return (c == 2 * r + phase).astype(jnp.float32)

    def conv_transpose_silu(xf, L, w_stacked, b_stacked):
        # ConvTranspose1d(k=6, s=2) + SiLU in polyphase form: the even/odd
        # output phases are two 3-tap correlations over the (pad=2) input,
        # stacked as rows [even | odd] of one dot; interleave via spread dots.
        Cout = w_stacked.shape[0] // 2
        y, L_ph = conv_silu(xf, L, w_stacked, b_stacked, K=3, pad=2)
        n = B * L_ph
        out = (jnp.dot(y[:Cout], spread(n, 0), preferred_element_type=jnp.float32)
               + jnp.dot(y[Cout:], spread(n, 1), preferred_element_type=jnp.float32))
        return out, 2 * L_ph

    def res_block(xf, L, w, bias):
        # res_block: x + silu(Conv1d(k=3, s=1, p=1)(x))
        y, _ = conv_silu(xf, L, w, bias, K=3, pad=1)
        return xf + y

    # Fold batch onto the lane axis once: (Cin, B*L).
    h = jnp.concatenate([x_ref[b] for b in range(B)], axis=1)
    L = x_ref.shape[2]

    h, L = conv_transpose_silu(h, L, wu1_ref[...], bu1_ref[...])   # 12 -> 8 ch
    h = res_block(h, L, wr3a_ref[...], br3a_ref[...])
    h = res_block(h, L, wr3b_ref[...], br3b_ref[...])
    h, L = conv_transpose_silu(h, L, wu2_ref[...], bu2_ref[...])   # 8 -> 4 ch
    h = res_block(h, L, wr2a_ref[...], br2a_ref[...])
    h = res_block(h, L, wr2b_ref[...], br2b_ref[...])
    h, L = conv_transpose_silu(h, L, wu3_ref[...], bu3_ref[...])   # 4 -> 1 ch

    for b in range(B):                       # (1, B*L) -> (B, 1, L)
        o_ref[b] = h[:, b * L:(b + 1) * L]


# ---------------------------------------------------------------------------
# One-time weight re-layout (all flips / transposes / reshapes hoisted here).
# ---------------------------------------------------------------------------
def prepare_params(p):
    def prep_ct(w_t, bias):
        # ConvTranspose1d weight (Cin, Cout, 6) -> stacked polyphase
        # correlation matrix (2*Cout, 3*Cin), rows = [even phase | odd phase].
        Cin, Cout, _ = w_t.shape
        w_e = jnp.stack([w_t[:, :, 4], w_t[:, :, 2], w_t[:, :, 0]], axis=-1)
        w_o = jnp.stack([w_t[:, :, 5], w_t[:, :, 3], w_t[:, :, 1]], axis=-1)
        to_mat = lambda wp: jnp.transpose(wp, (1, 2, 0)).reshape(Cout, 3 * Cin)
        W = jnp.concatenate([to_mat(w_e), to_mat(w_o)], axis=0)
        b = jnp.concatenate([bias, bias]).reshape(2 * Cout, 1)
        return [W, b]

    def prep_conv(w, bias):
        # Conv1d weight (Cout, Cin, 3) -> (Cout, 3*Cin), tap-major columns.
        Cout, Cin, K = w.shape
        return [jnp.transpose(w, (0, 2, 1)).reshape(Cout, K * Cin),
                bias.reshape(Cout, 1)]

    flat = []
    flat += prep_ct(p['upc_w'], p['upc_b'])
    for w, b in p['res3']:
        flat += prep_conv(w, b)
    flat += prep_ct(p['upc2_w'], p['upc2_b'])
    for w, b in p['res2']:
        flat += prep_conv(w, b)
    flat += prep_ct(p['upc3_w'], p['upc3_b'])
    return [jnp.asarray(a, jnp.float32) for a in flat]


@jax.jit
def de_cov_forward(x, prepared):
    B, _, L = x.shape
    L_out = ((L * 2 + 4) * 2 + 4) * 2 + 4          # three (k=6, s=2) transposes
    n_in = 1 + len(prepared)
    return pl.pallas_call(
        fused_de_cov_kernel,
        out_shape=jax.ShapeDtypeStruct((B, 1, L_out), jnp.float32),
        in_specs=[pl.BlockSpec(memory_space=pltpu.MemorySpace.VMEM)] * n_in,
        out_specs=pl.BlockSpec(memory_space=pltpu.MemorySpace.VMEM),
    )(x, *prepared)


# ---------------------------------------------------------------------------
# Deterministic parameter init (PyTorch-style uniform(+-1/sqrt(fan_in)))
# ---------------------------------------------------------------------------
def init_params(key):
    ks = jax.random.split(key, 14)

    def u(k, shape, fan_in):
        bound = 1.0 / math.sqrt(fan_in)
        return jax.random.uniform(k, shape, jnp.float32, -bound, bound)

    return {
        'upc_w': u(ks[0], (12, 8, 6), 12 * 6), 'upc_b': u(ks[1], (8,), 12 * 6),
        'res3': [(u(ks[2], (8, 8, 3), 8 * 3), u(ks[3], (8,), 8 * 3)),
                 (u(ks[4], (8, 8, 3), 8 * 3), u(ks[5], (8,), 8 * 3))],
        'upc2_w': u(ks[6], (8, 4, 6), 8 * 6), 'upc2_b': u(ks[7], (4,), 8 * 6),
        'res2': [(u(ks[8], (4, 4, 3), 4 * 3), u(ks[9], (4,), 4 * 3)),
                 (u(ks[10], (4, 4, 3), 4 * 3), u(ks[11], (4,), 4 * 3))],
        'upc3_w': u(ks[12], (4, 1, 6), 4 * 6), 'upc3_b': u(ks[13], (1,), 4 * 6),
    }


# ---------------------------------------------------------------------------
# Pure-JAX reference (lax convolutions) for a correctness check
# ---------------------------------------------------------------------------
def ref_forward(x, p):
    silu = lambda v: v * jax.nn.sigmoid(v)

    def convT(x, w_t, b):
        K = w_t.shape[2]
        w_conv = jnp.transpose(jnp.flip(w_t, 2), (1, 0, 2))
        y = jax.lax.conv_general_dilated(
            x, w_conv, window_strides=(1,), padding=[(K - 1, K - 1)],
            lhs_dilation=(2,), dimension_numbers=('NCH', 'OIH', 'NCH'))
        return y + b[None, :, None]

    def conv(x, w, b):
        y = jax.lax.conv_general_dilated(
            x, w, (1,), [(1, 1)], dimension_numbers=('NCH', 'OIH', 'NCH'))
        return y + b[None, :, None]

    x = silu(convT(x, p['upc_w'], p['upc_b']))
    for w, b in p['res3']:
        x = x + silu(conv(x, w, b))
    x = silu(convT(x, p['upc2_w'], p['upc2_b']))
    for w, b in p['res2']:
        x = x + silu(conv(x, w, b))
    x = silu(convT(x, p['upc3_w'], p['upc3_b']))
    return x


if __name__ == "__main__":
    key = jax.random.PRNGKey(0)
    kx, kp = jax.random.split(key)
    # de_cov input: (batch, 12 channels, seq)
    x = jax.random.normal(kx, (2, 12, 8), jnp.float32)
    params = init_params(kp)
    prepared = prepare_params(params)          # one-time weight re-layout

    out = jax.block_until_ready(de_cov_forward(x, prepared))
    assert out.shape == (2, 1, 92), out.shape

    ref = jax.block_until_ready(ref_forward(x, params))
    assert jnp.allclose(out, ref, atol=2e-4, rtol=2e-4), \
        float(jnp.max(jnp.abs(out - ref)))

    print("KERNEL_OK")
</pallas_src>

<mosaic_0001>
module attributes {stable_mosaic.version = 11 : i64} {
  func.func @fused_de_cov_kernel(%arg0: memref<2x12x8xf32, #tpu.memory_space<vmem>>, %arg1: memref<16x36xf32, #tpu.memory_space<vmem>>, %arg2: memref<16x1xf32, #tpu.memory_space<vmem>>, %arg3: memref<8x24xf32, #tpu.memory_space<vmem>>, %arg4: memref<8x1xf32, #tpu.memory_space<vmem>>, %arg5: memref<8x24xf32, #tpu.memory_space<vmem>>, %arg6: memref<8x1xf32, #tpu.memory_space<vmem>>, %arg7: memref<8x24xf32, #tpu.memory_space<vmem>>, %arg8: memref<8x1xf32, #tpu.memory_space<vmem>>, %arg9: memref<4x12xf32, #tpu.memory_space<vmem>>, %arg10: memref<4x1xf32, #tpu.memory_space<vmem>>, %arg11: memref<4x12xf32, #tpu.memory_space<vmem>>, %arg12: memref<4x1xf32, #tpu.memory_space<vmem>>, %arg13: memref<2x12xf32, #tpu.memory_space<vmem>>, %arg14: memref<2x1xf32, #tpu.memory_space<vmem>>, %arg15: memref<2x1x92xf32, #tpu.memory_space<vmem>>) attributes {dimension_semantics = [], scalar_prefetch = 0 : i64, scratch_operands = 0 : i64, tpu.core_type = #tpu.core_type<tc>} {
    %c0 = arith.constant 0 : index
    %c0_0 = arith.constant 0 : index
    %c0_1 = arith.constant 0 : index
    %0 = vector.load %arg0[%c0, %c0_0, %c0_1] : memref<2x12x8xf32, #tpu.memory_space<vmem>>, vector<1x12x8xf32>
    %1 = vector.shape_cast %0 : vector<1x12x8xf32> to vector<12x8xf32>
    %c1 = arith.constant 1 : index
    %c0_2 = arith.constant 0 : index
    %c0_3 = arith.constant 0 : index
    %2 = vector.load %arg0[%c1, %c0_2, %c0_3] : memref<2x12x8xf32, #tpu.memory_space<vmem>>, vector<1x12x8xf32>
    %3 = vector.shape_cast %2 : vector<1x12x8xf32> to vector<12x8xf32>
    %4 = tpu.concatenate %1, %3 in 1 : vector<12x8xf32>, vector<12x8xf32> -> vector<12x16xf32>
    %c0_4 = arith.constant 0 : index
    %c0_5 = arith.constant 0 : index
    %5 = vector.load %arg1[%c0_4, %c0_5] : memref<16x36xf32, #tpu.memory_space<vmem>>, vector<16x36xf32>
    %c0_6 = arith.constant 0 : index
    %c0_7 = arith.constant 0 : index
    %6 = vector.load %arg2[%c0_6, %c0_7] : memref<16x1xf32, #tpu.memory_space<vmem>>, vector<16x1xf32>
    %cst = arith.constant 0.000000e+00 : f32
    %7 = vector.broadcast %cst : f32 to vector<12x2xf32>
    %8 = vector.extract_strided_slice %4 {offsets = [0, 0], sizes = [12, 8], strides = [1, 1]} : vector<12x16xf32> to vector<12x8xf32>
    %9 = vector.extract_strided_slice %4 {offsets = [0, 8], sizes = [12, 8], strides = [1, 1]} : vector<12x16xf32> to vector<12x8xf32>
    %10 = tpu.concatenate %7, %8, %7, %7, %9, %7 in 1 : vector<12x2xf32>, vector<12x8xf32>, vector<12x2xf32>, vector<12x2xf32>, vector<12x8xf32>, vector<12x2xf32> -> vector<12x24xf32>
    %11 = vector.extract_strided_slice %10 {offsets = [0, 0], sizes = [12, 12], strides = [1, 1]} : vector<12x24xf32> to vector<12x12xf32>
    %12 = vector.extract_strided_slice %11 {offsets = [0, 0], sizes = [12, 10], strides = [1, 1]} : vector<12x12xf32> to vector<12x10xf32>
    %13 = vector.extract_strided_slice %11 {offsets = [0, 1], sizes = [12, 10], strides = [1, 1]} : vector<12x12xf32> to vector<12x10xf32>
    %14 = vector.extract_strided_slice %11 {offsets = [0, 2], sizes = [12, 10], strides = [1, 1]} : vector<12x12xf32> to vector<12x10xf32>
    %15 = tpu.concatenate %12, %13, %14 in 0 : vector<12x10xf32>, vector<12x10xf32>, vector<12x10xf32> -> vector<36x10xf32>
    %16 = vector.extract_strided_slice %10 {offsets = [0, 12], sizes = [12, 12], strides = [1, 1]} : vector<12x24xf32> to vector<12x12xf32>
    %17 = vector.extract_strided_slice %16 {offsets = [0, 0], sizes = [12, 10], strides = [1, 1]} : vector<12x12xf32> to vector<12x10xf32>
    %18 = vector.extract_strided_slice %16 {offsets = [0, 1], sizes = [12, 10], strides = [1, 1]} : vector<12x12xf32> to vector<12x10xf32>
    %19 = vector.extract_strided_slice %16 {offsets = [0, 2], sizes = [12, 10], strides = [1, 1]} : vector<12x12xf32> to vector<12x10xf32>
    %20 = tpu.concatenate %17, %18, %19 in 0 : vector<12x10xf32>, vector<12x10xf32>, vector<12x10xf32> -> vector<36x10xf32>
    %21 = tpu.concatenate %15, %20 in 1 : vector<36x10xf32>, vector<36x10xf32> -> vector<36x20xf32>
    %cst_8 = arith.constant dense<0.000000e+00> : vector<16x20xf32>
    %22 = tpu.matmul %5, %21, %cst_8 {dimension_numbers = #tpu.dot_dimension_numbers<[1], [0], [0], [1], [0, 0, 1, 1], [], []>} : vector<16x36xf32>, vector<36x20xf32>, vector<16x20xf32> -> vector<16x20xf32>
    %23 = vector.broadcast %6 : vector<16x1xf32> to vector<16x20xf32>
    %24 = arith.addf %22, %23 : vector<16x20xf32>
    %25 = math.absf %24 : vector<16x20xf32>
    %cst_9 = arith.constant 0.000000e+00 : f32
    %26 = vector.broadcast %cst_9 : f32 to vector<16x20xf32>
    %27 = arith.subf %26, %25 : vector<16x20xf32>
    %28 = math.exp %27 : vector<16x20xf32>
    %cst_10 = arith.constant 1.000000e+00 : f32
    %29 = vector.broadcast %cst_10 : f32 to vector<16x20xf32>
    %30 = arith.addf %29, %28 : vector<16x20xf32>
    %cst_11 = arith.constant 1.000000e+00 : f32
    %31 = vector.broadcast %cst_11 : f32 to vector<16x20xf32>
    %32 = arith.divf %31, %30 : vector<16x20xf32>
    %cst_12 = arith.constant 0.000000e+00 : f32
    %33 = vector.broadcast %cst_12 : f32 to vector<16x20xf32>
    %34 = arith.cmpf oge, %24, %33 : vector<16x20xf32>
    %35 = arith.mulf %28, %32 : vector<16x20xf32>
    %36 = arith.select %34, %32, %35 : vector<16x20xi1>, vector<16x20xf32>
    %37 = arith.mulf %24, %36 : vector<16x20xf32>
    %38 = vector.extract_strided_slice %37 {offsets = [0, 0], sizes = [8, 20], strides = [1, 1]} : vector<16x20xf32> to vector<8x20xf32>
    %39 = tpu.iota {dimensions = array<i32: 0>} : vector<20x40xi32>
    %40 = tpu.iota {dimensions = array<i32: 1>} : vector<20x40xi32>
    %c2_i32 = arith.constant 2 : i32
    %41 = vector.broadcast %c2_i32 : i32 to vector<20x40xi32>
    %42 = arith.muli %41, %39 : vector<20x40xi32>
    %c0_i32 = arith.constant 0 : i32
    %43 = vector.broadcast %c0_i32 : i32 to vector<20x40xi32>
    %44 = arith.addi %42, %43 : vector<20x40xi32>
    %45 = arith.cmpi eq, %40, %44 : vector<20x40xi32>
    %46 = arith.extui %45 : vector<20x40xi1> to vector<20x40xi32>
    %47 = arith.sitofp %46 : vector<20x40xi32> to vector<20x40xf32>
    %cst_13 = arith.constant dense<0.000000e+00> : vector<8x40xf32>
    %48 = tpu.matmul %38, %47, %cst_13 {dimension_numbers = #tpu.dot_dimension_numbers<[1], [0], [0], [1], [0, 0, 1, 1], [], []>} : vector<8x20xf32>, vector<20x40xf32>, vector<8x40xf32> -> vector<8x40xf32>
    %49 = vector.extract_strided_slice %37 {offsets = [8, 0], sizes = [8, 20], strides = [1, 1]} : vector<16x20xf32> to vector<8x20xf32>
    %50 = tpu.iota {dimensions = array<i32: 0>} : vector<20x40xi32>
    %51 = tpu.iota {dimensions = array<i32: 1>} : vector<20x40xi32>
    %c2_i32_14 = arith.constant 2 : i32
    %52 = vector.broadcast %c2_i32_14 : i32 to vector<20x40xi32>
    %53 = arith.muli %52, %50 : vector<20x40xi32>
    %c1_i32 = arith.constant 1 : i32
    %54 = vector.broadcast %c1_i32 : i32 to vector<20x40xi32>
    %55 = arith.addi %53, %54 : vector<20x40xi32>
    %56 = arith.cmpi eq, %51, %55 : vector<20x40xi32>
    %57 = arith.extui %56 : vector<20x40xi1> to vector<20x40xi32>
    %58 = arith.sitofp %57 : vector<20x40xi32> to vector<20x40xf32>
    %cst_15 = arith.constant dense<0.000000e+00> : vector<8x40xf32>
    %59 = tpu.matmul %49, %58, %cst_15 {dimension_numbers = #tpu.dot_dimension_numbers<[1], [0], [0], [1], [0, 0, 1, 1], [], []>} : vector<8x20xf32>, vector<20x40xf32>, vector<8x40xf32> -> vector<8x40xf32>
    %60 = arith.addf %48, %59 : vector<8x40xf32>
    %c0_16 = arith.constant 0 : index
    %c0_17 = arith.constant 0 : index
    %61 = vector.load %arg3[%c0_16, %c0_17] : memref<8x24xf32, #tpu.memory_space<vmem>>, vector<8x24xf32>
    %c0_18 = arith.constant 0 : index
    %c0_19 = arith.constant 0 : index
    %62 = vector.load %arg4[%c0_18, %c0_19] : memref<8x1xf32, #tpu.memory_space<vmem>>, vector<8x1xf32>
    %cst_20 = arith.constant 0.000000e+00 : f32
    %63 = vector.broadcast %cst_20 : f32 to vector<8x1xf32>
    %64 = vector.extract_strided_slice %60 {offsets = [0, 0], sizes = [8, 20], strides = [1, 1]} : vector<8x40xf32> to vector<8x20xf32>
    %65 = vector.extract_strided_slice %60 {offsets = [0, 20], sizes = [8, 20], strides = [1, 1]} : vector<8x40xf32> to vector<8x20xf32>
    %66 = tpu.concatenate %63, %64, %63, %63, %65, %63 in 1 : vector<8x1xf32>, vector<8x20xf32>, vector<8x1xf32>, vector<8x1xf32>, vector<8x20xf32>, vector<8x1xf32> -> vector<8x44xf32>
    %67 = vector.extract_strided_slice %66 {offsets = [0, 0], sizes = [8, 22], strides = [1, 1]} : vector<8x44xf32> to vector<8x22xf32>
    %68 = vector.extract_strided_slice %67 {offsets = [0, 0], sizes = [8, 20], strides = [1, 1]} : vector<8x22xf32> to vector<8x20xf32>
    %69 = vector.extract_strided_slice %67 {offsets = [0, 1], sizes = [8, 20], strides = [1, 1]} : vector<8x22xf32> to vector<8x20xf32>
    %70 = vector.extract_strided_slice %67 {offsets = [0, 2], sizes = [8, 20], strides = [1, 1]} : vector<8x22xf32> to vector<8x20xf32>
    %71 = tpu.concatenate %68, %69, %70 in 0 : vector<8x20xf32>, vector<8x20xf32>, vector<8x20xf32> -> vector<24x20xf32>
    %72 = vector.extract_strided_slice %66 {offsets = [0, 22], sizes = [8, 22], strides = [1, 1]} : vector<8x44xf32> to vector<8x22xf32>
    %73 = vector.extract_strided_slice %72 {offsets = [0, 0], sizes = [8, 20], strides = [1, 1]} : vector<8x22xf32> to vector<8x20xf32>
    %74 = vector.extract_strided_slice %72 {offsets = [0, 1], sizes = [8, 20], strides = [1, 1]} : vector<8x22xf32> to vector<8x20xf32>
    %75 = vector.extract_strided_slice %72 {offsets = [0, 2], sizes = [8, 20], strides = [1, 1]} : vector<8x22xf32> to vector<8x20xf32>
    %76 = tpu.concatenate %73, %74, %75 in 0 : vector<8x20xf32>, vector<8x20xf32>, vector<8x20xf32> -> vector<24x20xf32>
    %77 = tpu.concatenate %71, %76 in 1 : vector<24x20xf32>, vector<24x20xf32> -> vector<24x40xf32>
    %cst_21 = arith.constant dense<0.000000e+00> : vector<8x40xf32>
    %78 = tpu.matmul %61, %77, %cst_21 {dimension_numbers = #tpu.dot_dimension_numbers<[1], [0], [0], [1], [0, 0, 1, 1], [], []>} : vector<8x24xf32>, vector<24x40xf32>, vector<8x40xf32> -> vector<8x40xf32>
    %79 = vector.broadcast %62 : vector<8x1xf32> to vector<8x40xf32>
    %80 = arith.addf %78, %79 : vector<8x40xf32>
    %81 = math.absf %80 : vector<8x40xf32>
    %cst_22 = arith.constant 0.000000e+00 : f32
    %82 = vector.broadcast %cst_22 : f32 to vector<8x40xf32>
    %83 = arith.subf %82, %81 : vector<8x40xf32>
    %84 = math.exp %83 : vector<8x40xf32>
    %cst_23 = arith.constant 1.000000e+00 : f32
    %85 = vector.broadcast %cst_23 : f32 to vector<8x40xf32>
    %86 = arith.addf %85, %84 : vector<8x40xf32>
    %cst_24 = arith.constant 1.000000e+00 : f32
    %87 = vector.broadcast %cst_24 : f32 to vector<8x40xf32>
    %88 = arith.divf %87, %86 : vector<8x40xf32>
    %cst_25 = arith.constant 0.000000e+00 : f32
    %89 = vector.broadcast %cst_25 : f32 to vector<8x40xf32>
    %90 = arith.cmpf oge, %80, %89 : vector<8x40xf32>
    %91 = arith.mulf %84, %88 : vector<8x40xf32>
    %92 = arith.select %90, %88, %91 : vector<8x40xi1>, vector<8x40xf32>
    %93 = arith.mulf %80, %92 : vector<8x40xf32>
    %94 = arith.addf %60, %93 : vector<8x40xf32>
    %c0_26 = arith.constant 0 : index
    %c0_27 = arith.constant 0 : index
    %95 = vector.load %arg5[%c0_26, %c0_27] : memref<8x24xf32, #tpu.memory_space<vmem>>, vector<8x24xf32>
    %c0_28 = arith.constant 0 : index
    %c0_29 = arith.constant 0 : index
    %96 = vector.load %arg6[%c0_28, %c0_29] : memref<8x1xf32, #tpu.memory_space<vmem>>, vector<8x1xf32>
    %cst_30 = arith.constant 0.000000e+00 : f32
    %97 = vector.broadcast %cst_30 : f32 to vector<8x1xf32>
    %98 = vector.extract_strided_slice %94 {offsets = [0, 0], sizes = [8, 20], strides = [1, 1]} : vector<8x40xf32> to vector<8x20xf32>
    %99 = vector.extract_strided_slice %94 {offsets = [0, 20], sizes = [8, 20], strides = [1, 1]} : vector<8x40xf32> to vector<8x20xf32>
    %100 = tpu.concatenate %97, %98, %97, %97, %99, %97 in 1 : vector<8x1xf32>, vector<8x20xf32>, vector<8x1xf32>, vector<8x1xf32>, vector<8x20xf32>, vector<8x1xf32> -> vector<8x44xf32>
    %101 = vector.extract_strided_slice %100 {offsets = [0, 0], sizes = [8, 22], strides = [1, 1]} : vector<8x44xf32> to vector<8x22xf32>
    %102 = vector.extract_strided_slice %101 {offsets = [0, 0], sizes = [8, 20], strides = [1, 1]} : vector<8x22xf32> to vector<8x20xf32>
    %103 = vector.extract_strided_slice %101 {offsets = [0, 1], sizes = [8, 20], strides = [1, 1]} : vector<8x22xf32> to vector<8x20xf32>
    %104 = vector.extract_strided_slice %101 {offsets = [0, 2], sizes = [8, 20], strides = [1, 1]} : vector<8x22xf32> to vector<8x20xf32>
    %105 = tpu.concatenate %102, %103, %104 in 0 : vector<8x20xf32>, vector<8x20xf32>, vector<8x20xf32> -> vector<24x20xf32>
    %106 = vector.extract_strided_slice %100 {offsets = [0, 22], sizes = [8, 22], strides = [1, 1]} : vector<8x44xf32> to vector<8x22xf32>
    %107 = vector.extract_strided_slice %106 {offsets = [0, 0], sizes = [8, 20], strides = [1, 1]} : vector<8x22xf32> to vector<8x20xf32>
    %108 = vector.extract_strided_slice %106 {offsets = [0, 1], sizes = [8, 20], strides = [1, 1]} : vector<8x22xf32> to vector<8x20xf32>
    %109 = vector.extract_strided_slice %106 {offsets = [0, 2], sizes = [8, 20], strides = [1, 1]} : vector<8x22xf32> to vector<8x20xf32>
    %110 = tpu.concatenate %107, %108, %109 in 0 : vector<8x20xf32>, vector<8x20xf32>, vector<8x20xf32> -> vector<24x20xf32>
    %111 = tpu.concatenate %105, %110 in 1 : vector<24x20xf32>, vector<24x20xf32> -> vector<24x40xf32>
    %cst_31 = arith.constant dense<0.000000e+00> : vector<8x40xf32>
    %112 = tpu.matmul %95, %111, %cst_31 {dimension_numbers = #tpu.dot_dimension_numbers<[1], [0], [0], [1], [0, 0, 1, 1], [], []>} : vector<8x24xf32>, vector<24x40xf32>, vector<8x40xf32> -> vector<8x40xf32>
    %113 = vector.broadcast %96 : vector<8x1xf32> to vector<8x40xf32>
    %114 = arith.addf %112, %113 : vector<8x40xf32>
    %115 = math.absf %114 : vector<8x40xf32>
    %cst_32 = arith.constant 0.000000e+00 : f32
    %116 = vector.broadcast %cst_32 : f32 to vector<8x40xf32>
    %117 = arith.subf %116, %115 : vector<8x40xf32>
    %118 = math.exp %117 : vector<8x40xf32>
    %cst_33 = arith.constant 1.000000e+00 : f32
    %119 = vector.broadcast %cst_33 : f32 to vector<8x40xf32>
    %120 = arith.addf %119, %118 : vector<8x40xf32>
    %cst_34 = arith.constant 1.000000e+00 : f32
    %121 = vector.broadcast %cst_34 : f32 to vector<8x40xf32>
    %122 = arith.divf %121, %120 : vector<8x40xf32>
    %cst_35 = arith.constant 0.000000e+00 : f32
    %123 = vector.broadcast %cst_35 : f32 to vector<8x40xf32>
    %124 = arith.cmpf oge, %114, %123 : vector<8x40xf32>
    %125 = arith.mulf %118, %122 : vector<8x40xf32>
    %126 = arith.select %124, %122, %125 : vector<8x40xi1>, vector<8x40xf32>
    %127 = arith.mulf %114, %126 : vector<8x40xf32>
    %128 = arith.addf %94, %127 : vector<8x40xf32>
    %c0_36 = arith.constant 0 : index
    %c0_37 = arith.constant 0 : index
    %129 = vector.load %arg7[%c0_36, %c0_37] : memref<8x24xf32, #tpu.memory_space<vmem>>, vector<8x24xf32>
    %c0_38 = arith.constant 0 : index
    %c0_39 = arith.constant 0 : index
    %130 = vector.load %arg8[%c0_38, %c0_39] : memref<8x1xf32, #tpu.memory_space<vmem>>, vector<8x1xf32>
    %cst_40 = arith.constant 0.000000e+00 : f32
    %131 = vector.broadcast %cst_40 : f32 to vector<8x2xf32>
    %132 = vector.extract_strided_slice %128 {offsets = [0, 0], sizes = [8, 20], strides = [1, 1]} : vector<8x40xf32> to vector<8x20xf32>
    %133 = vector.extract_strided_slice %128 {offsets = [0, 20], sizes = [8, 20], strides = [1, 1]} : vector<8x40xf32> to vector<8x20xf32>
    %134 = tpu.concatenate %131, %132, %131, %131, %133, %131 in 1 : vector<8x2xf32>, vector<8x20xf32>, vector<8x2xf32>, vector<8x2xf32>, vector<8x20xf32>, vector<8x2xf32> -> vector<8x48xf32>
    %135 = vector.extract_strided_slice %134 {offsets = [0, 0], sizes = [8, 24], strides = [1, 1]} : vector<8x48xf32> to vector<8x24xf32>
    %136 = vector.extract_strided_slice %135 {offsets = [0, 0], sizes = [8, 22], strides = [1, 1]} : vector<8x24xf32> to vector<8x22xf32>
    %137 = vector.extract_strided_slice %135 {offsets = [0, 1], sizes = [8, 22], strides = [1, 1]} : vector<8x24xf32> to vector<8x22xf32>
    %138 = vector.extract_strided_slice %135 {offsets = [0, 2], sizes = [8, 22], strides = [1, 1]} : vector<8x24xf32> to vector<8x22xf32>
    %139 = tpu.concatenate %136, %137, %138 in 0 : vector<8x22xf32>, vector<8x22xf32>, vector<8x22xf32> -> vector<24x22xf32>
    %140 = vector.extract_strided_slice %134 {offsets = [0, 24], sizes = [8, 24], strides = [1, 1]} : vector<8x48xf32> to vector<8x24xf32>
    %141 = vector.extract_strided_slice %140 {offsets = [0, 0], sizes = [8, 22], strides = [1, 1]} : vector<8x24xf32> to vector<8x22xf32>
    %142 = vector.extract_strided_slice %140 {offsets = [0, 1], sizes = [8, 22], strides = [1, 1]} : vector<8x24xf32> to vector<8x22xf32>
    %143 = vector.extract_strided_slice %140 {offsets = [0, 2], sizes = [8, 22], strides = [1, 1]} : vector<8x24xf32> to vector<8x22xf32>
    %144 = tpu.concatenate %141, %142, %143 in 0 : vector<8x22xf32>, vector<8x22xf32>, vector<8x22xf32> -> vector<24x22xf32>
    %145 = tpu.concatenate %139, %144 in 1 : vector<24x22xf32>, vector<24x22xf32> -> vector<24x44xf32>
    %cst_41 = arith.constant dense<0.000000e+00> : vector<8x44xf32>
    %146 = tpu.matmul %129, %145, %cst_41 {dimension_numbers = #tpu.dot_dimension_numbers<[1], [0], [0], [1], [0, 0, 1, 1], [], []>} : vector<8x24xf32>, vector<24x44xf32>, vector<8x44xf32> -> vector<8x44xf32>
    %147 = vector.broadcast %130 : vector<8x1xf32> to vector<8x44xf32>
    %148 = arith.addf %146, %147 : vector<8x44xf32>
    %149 = math.absf %148 : vector<8x44xf32>
    %cst_42 = arith.constant 0.000000e+00 : f32
    %150 = vector.broadcast %cst_42 : f32 to vector<8x44xf32>
    %151 = arith.subf %150, %149 : vector<8x44xf32>
    %152 = math.exp %151 : vector<8x44xf32>
    %cst_43 = arith.constant 1.000000e+00 : f32
    %153 = vector.broadcast %cst_43 : f32 to vector<8x44xf32>
    %154 = arith.addf %153, %152 : vector<8x44xf32>
    %cst_44 = arith.constant 1.000000e+00 : f32
    %155 = vector.broadcast %cst_44 : f32 to vector<8x44xf32>
    %156 = arith.divf %155, %154 : vector<8x44xf32>
    %cst_45 = arith.constant 0.000000e+00 : f32
    %157 = vector.broadcast %cst_45 : f32 to vector<8x44xf32>
    %158 = arith.cmpf oge, %148, %157 : vector<8x44xf32>
    %159 = arith.mulf %152, %156 : vector<8x44xf32>
    %160 = arith.select %158, %156, %159 : vector<8x44xi1>, vector<8x44xf32>
    %161 = arith.mulf %148, %160 : vector<8x44xf32>
    %162 = vector.extract_strided_slice %161 {offsets = [0, 0], sizes = [4, 44], strides = [1, 1]} : vector<8x44xf32> to vector<4x44xf32>
    %163 = tpu.iota {dimensions = array<i32: 0>} : vector<44x88xi32>
    %164 = tpu.iota {dimensions = array<i32: 1>} : vector<44x88xi32>
    %c2_i32_46 = arith.constant 2 : i32
    %165 = vector.broadcast %c2_i32_46 : i32 to vector<44x88xi32>
    %166 = arith.muli %165, %163 : vector<44x88xi32>
    %c0_i32_47 = arith.constant 0 : i32
    %167 = vector.broadcast %c0_i32_47 : i32 to vector<44x88xi32>
    %168 = arith.addi %166, %167 : vector<44x88xi32>
    %169 = arith.cmpi eq, %164, %168 : vector<44x88xi32>
    %170 = arith.extui %169 : vector<44x88xi1> to vector<44x88xi32>
    %171 = arith.sitofp %170 : vector<44x88xi32> to vector<44x88xf32>
    %cst_48 = arith.constant dense<0.000000e+00> : vector<4x88xf32>
    %172 = tpu.matmul %162, %171, %cst_48 {dimension_numbers = #tpu.dot_dimension_numbers<[1], [0], [0], [1], [0, 0, 1, 1], [], []>} : vector<4x44xf32>, vector<44x88xf32>, vector<4x88xf32> -> vector<4x88xf32>
    %173 = vector.extract_strided_slice %161 {offsets = [4, 0], sizes = [4, 44], strides = [1, 1]} : vector<8x44xf32> to vector<4x44xf32>
    %174 = tpu.iota {dimensions = array<i32: 0>} : vector<44x88xi32>
    %175 = tpu.iota {dimensions = array<i32: 1>} : vector<44x88xi32>
    %c2_i32_49 = arith.constant 2 : i32
    %176 = vector.broadcast %c2_i32_49 : i32 to vector<44x88xi32>
    %177 = arith.muli %176, %174 : vector<44x88xi32>
    %c1_i32_50 = arith.constant 1 : i32
    %178 = vector.broadcast %c1_i32_50 : i32 to vector<44x88xi32>
    %179 = arith.addi %177, %178 : vector<44x88xi32>
    %180 = arith.cmpi eq, %175, %179 : vector<44x88xi32>
    %181 = arith.extui %180 : vector<44x88xi1> to vector<44x88xi32>
    %182 = arith.sitofp %181 : vector<44x88xi32> to vector<44x88xf32>
    %cst_51 = arith.constant dense<0.000000e+00> : vector<4x88xf32>
    %183 = tpu.matmul %173, %182, %cst_51 {dimension_numbers = #tpu.dot_dimension_numbers<[1], [0], [0], [1], [0, 0, 1, 1], [], []>} : vector<4x44xf32>, vector<44x88xf32>, vector<4x88xf32> -> vector<4x88xf32>
    %184 = arith.addf %172, %183 : vector<4x88xf32>
    %c0_52 = arith.constant 0 : index
    %c0_53 = arith.constant 0 : index
    %185 = vector.load %arg9[%c0_52, %c0_53] : memref<4x12xf32, #tpu.memory_space<vmem>>, vector<4x12xf32>
    %c0_54 = arith.constant 0 : index
    %c0_55 = arith.constant 0 : index
    %186 = vector.load %arg10[%c0_54, %c0_55] : memref<4x1xf32, #tpu.memory_space<vmem>>, vector<4x1xf32>
    %cst_56 = arith.constant 0.000000e+00 : f32
    %187 = vector.broadcast %cst_56 : f32 to vector<4x1xf32>
    %188 = vector.extract_strided_slice %184 {offsets = [0, 0], sizes = [4, 44], strides = [1, 1]} : vector<4x88xf32> to vector<4x44xf32>
    %189 = vector.extract_strided_slice %184 {offsets = [0, 44], sizes = [4, 44], strides = [1, 1]} : vector<4x88xf32> to vector<4x44xf32>
    %190 = tpu.concatenate %187, %188, %187, %187, %189, %187 in 1 : vector<4x1xf32>, vector<4x44xf32>, vector<4x1xf32>, vector<4x1xf32>, vector<4x44xf32>, vector<4x1xf32> -> vector<4x92xf32>
    %191 = vector.extract_strided_slice %190 {offsets = [0, 0], sizes = [4, 46], strides = [1, 1]} : vector<4x92xf32> to vector<4x46xf32>
    %192 = vector.extract_strided_slice %191 {offsets = [0, 0], sizes = [4, 44], strides = [1, 1]} : vector<4x46xf32> to vector<4x44xf32>
    %193 = vector.extract_strided_slice %191 {offsets = [0, 1], sizes = [4, 44], strides = [1, 1]} : vector<4x46xf32> to vector<4x44xf32>
    %194 = vector.extract_strided_slice %191 {offsets = [0, 2], sizes = [4, 44], strides = [1, 1]} : vector<4x46xf32> to vector<4x44xf32>
    %195 = tpu.concatenate %192, %193, %194 in 0 : vector<4x44xf32>, vector<4x44xf32>, vector<4x44xf32> -> vector<12x44xf32>
    %196 = vector.extract_strided_slice %190 {offsets = [0, 46], sizes = [4, 46], strides = [1, 1]} : vector<4x92xf32> to vector<4x46xf32>
    %197 = vector.extract_strided_slice %196 {offsets = [0, 0], sizes = [4, 44], strides = [1, 1]} : vector<4x46xf32> to vector<4x44xf32>
    %198 = vector.extract_strided_slice %196 {offsets = [0, 1], sizes = [4, 44], strides = [1, 1]} : vector<4x46xf32> to vector<4x44xf32>
    %199 = vector.extract_strided_slice %196 {offsets = [0, 2], sizes = [4, 44], strides = [1, 1]} : vector<4x46xf32> to vector<4x44xf32>
    %200 = tpu.concatenate %197, %198, %199 in 0 : vector<4x44xf32>, vector<4x44xf32>, vector<4x44xf32> -> vector<12x44xf32>
    %201 = tpu.concatenate %195, %200 in 1 : vector<12x44xf32>, vector<12x44xf32> -> vector<12x88xf32>
    %cst_57 = arith.constant dense<0.000000e+00> : vector<4x88xf32>
    %202 = tpu.matmul %185, %201, %cst_57 {dimension_numbers = #tpu.dot_dimension_numbers<[1], [0], [0], [1], [0, 0, 1, 1], [], []>} : vector<4x12xf32>, vector<12x88xf32>, vector<4x88xf32> -> vector<4x88xf32>
    %203 = vector.broadcast %186 : vector<4x1xf32> to vector<4x88xf32>
    %204 = arith.addf %202, %203 : vector<4x88xf32>
    %205 = math.absf %204 : vector<4x88xf32>
    %cst_58 = arith.constant 0.000000e+00 : f32
    %206 = vector.broadcast %cst_58 : f32 to vector<4x88xf32>
    %207 = arith.subf %206, %205 : vector<4x88xf32>
    %208 = math.exp %207 : vector<4x88xf32>
    %cst_59 = arith.constant 1.000000e+00 : f32
    %209 = vector.broadcast %cst_59 : f32 to vector<4x88xf32>
    %210 = arith.addf %209, %208 : vector<4x88xf32>
    %cst_60 = arith.constant 1.000000e+00 : f32
    %211 = vector.broadcast %cst_60 : f32 to vector<4x88xf32>
    %212 = arith.divf %211, %210 : vector<4x88xf32>
    %cst_61 = arith.constant 0.000000e+00 : f32
    %213 = vector.broadcast %cst_61 : f32 to vector<4x88xf32>
    %214 = arith.cmpf oge, %204, %213 : vector<4x88xf32>
    %215 = arith.mulf %208, %212 : vector<4x88xf32>
    %216 = arith.select %214, %212, %215 : vector<4x88xi1>, vector<4x88xf32>
    %217 = arith.mulf %204, %216 : vector<4x88xf32>
    %218 = arith.addf %184, %217 : vector<4x88xf32>
    %c0_62 = arith.constant 0 : index
    %c0_63 = arith.constant 0 : index
    %219 = vector.load %arg11[%c0_62, %c0_63] : memref<4x12xf32, #tpu.memory_space<vmem>>, vector<4x12xf32>
    %c0_64 = arith.constant 0 : index
    %c0_65 = arith.constant 0 : index
    %220 = vector.load %arg12[%c0_64, %c0_65] : memref<4x1xf32, #tpu.memory_space<vmem>>, vector<4x1xf32>
    %cst_66 = arith.constant 0.000000e+00 : f32
    %221 = vector.broadcast %cst_66 : f32 to vector<4x1xf32>
    %222 = vector.extract_strided_slice %218 {offsets = [0, 0], sizes = [4, 44], strides = [1, 1]} : vector<4x88xf32> to vector<4x44xf32>
    %223 = vector.extract_strided_slice %218 {offsets = [0, 44], sizes = [4, 44], strides = [1, 1]} : vector<4x88xf32> to vector<4x44xf32>
    %224 = tpu.concatenate %221, %222, %221, %221, %223, %221 in 1 : vector<4x1xf32>, vector<4x44xf32>, vector<4x1xf32>, vector<4x1xf32>, vector<4x44xf32>, vector<4x1xf32> -> vector<4x92xf32>
    %225 = vector.extract_strided_slice %224 {offsets = [0, 0], sizes = [4, 46], strides = [1, 1]} : vector<4x92xf32> to vector<4x46xf32>
    %226 = vector.extract_strided_slice %225 {offsets = [0, 0], sizes = [4, 44], strides = [1, 1]} : vector<4x46xf32> to vector<4x44xf32>
    %227 = vector.extract_strided_slice %225 {offsets = [0, 1], sizes = [4, 44], strides = [1, 1]} : vector<4x46xf32> to vector<4x44xf32>
    %228 = vector.extract_strided_slice %225 {offsets = [0, 2], sizes = [4, 44], strides = [1, 1]} : vector<4x46xf32> to vector<4x44xf32>
    %229 = tpu.concatenate %226, %227, %228 in 0 : vector<4x44xf32>, vector<4x44xf32>, vector<4x44xf32> -> vector<12x44xf32>
    %230 = vector.extract_strided_slice %224 {offsets = [0, 46], sizes = [4, 46], strides = [1, 1]} : vector<4x92xf32> to vector<4x46xf32>
    %231 = vector.extract_strided_slice %230 {offsets = [0, 0], sizes = [4, 44], strides = [1, 1]} : vector<4x46xf32> to vector<4x44xf32>
    %232 = vector.extract_strided_slice %230 {offsets = [0, 1], sizes = [4, 44], strides = [1, 1]} : vector<4x46xf32> to vector<4x44xf32>
    %233 = vector.extract_strided_slice %230 {offsets = [0, 2], sizes = [4, 44], strides = [1, 1]} : vector<4x46xf32> to vector<4x44xf32>
    %234 = tpu.concatenate %231, %232, %233 in 0 : vector<4x44xf32>, vector<4x44xf32>, vector<4x44xf32> -> vector<12x44xf32>
    %235 = tpu.concatenate %229, %234 in 1 : vector<12x44xf32>, vector<12x44xf32> -> vector<12x88xf32>
    %cst_67 = arith.constant dense<0.000000e+00> : vector<4x88xf32>
    %236 = tpu.matmul %219, %235, %cst_67 {dimension_numbers = #tpu.dot_dimension_numbers<[1], [0], [0], [1], [0, 0, 1, 1], [], []>} : vector<4x12xf32>, vector<12x88xf32>, vector<4x88xf32> -> vector<4x88xf32>
    %237 = vector.broadcast %220 : vector<4x1xf32> to vector<4x88xf32>
    %238 = arith.addf %236, %237 : vector<4x88xf32>
    %239 = math.absf %238 : vector<4x88xf32>
    %cst_68 = arith.constant 0.000000e+00 : f32
    %240 = vector.broadcast %cst_68 : f32 to vector<4x88xf32>
    %241 = arith.subf %240, %239 : vector<4x88xf32>
    %242 = math.exp %241 : vector<4x88xf32>
    %cst_69 = arith.constant 1.000000e+00 : f32
    %243 = vector.broadcast %cst_69 : f32 to vector<4x88xf32>
    %244 = arith.addf %243, %242 : vector<4x88xf32>
    %cst_70 = arith.constant 1.000000e+00 : f32
    %245 = vector.broadcast %cst_70 : f32 to vector<4x88xf32>
    %246 = arith.divf %245, %244 : vector<4x88xf32>
    %cst_71 = arith.constant 0.000000e+00 : f32
    %247 = vector.broadcast %cst_71 : f32 to vector<4x88xf32>
    %248 = arith.cmpf oge, %238, %247 : vector<4x88xf32>
    %249 = arith.mulf %242, %246 : vector<4x88xf32>
    %250 = arith.select %248, %246, %249 : vector<4x88xi1>, vector<4x88xf32>
    %251 = arith.mulf %238, %250 : vector<4x88xf32>
    %252 = arith.addf %218, %251 : vector<4x88xf32>
    %c0_72 = arith.constant 0 : index
    %c0_73 = arith.constant 0 : index
    %253 = vector.load %arg13[%c0_72, %c0_73] : memref<2x12xf32, #tpu.memory_space<vmem>>, vector<2x12xf32>
    %c0_74 = arith.constant 0 : index
    %c0_75 = arith.constant 0 : index
    %254 = vector.load %arg14[%c0_74, %c0_75] : memref<2x1xf32, #tpu.memory_space<vmem>>, vector<2x1xf32>
    %cst_76 = arith.constant 0.000000e+00 : f32
    %255 = vector.broadcast %cst_76 : f32 to vector<4x2xf32>
    %256 = vector.extract_strided_slice %252 {offsets = [0, 0], sizes = [4, 44], strides = [1, 1]} : vector<4x88xf32> to vector<4x44xf32>
    %257 = vector.extract_strided_slice %252 {offsets = [0, 44], sizes = [4, 44], strides = [1, 1]} : vector<4x88xf32> to vector<4x44xf32>
    %258 = tpu.concatenate %255, %256, %255, %255, %257, %255 in 1 : vector<4x2xf32>, vector<4x44xf32>, vector<4x2xf32>, vector<4x2xf32>, vector<4x44xf32>, vector<4x2xf32> -> vector<4x96xf32>
    %259 = vector.extract_strided_slice %258 {offsets = [0, 0], sizes = [4, 48], strides = [1, 1]} : vector<4x96xf32> to vector<4x48xf32>
    %260 = vector.extract_strided_slice %259 {offsets = [0, 0], sizes = [4, 46], strides = [1, 1]} : vector<4x48xf32> to vector<4x46xf32>
    %261 = vector.extract_strided_slice %259 {offsets = [0, 1], sizes = [4, 46], strides = [1, 1]} : vector<4x48xf32> to vector<4x46xf32>
    %262 = vector.extract_strided_slice %259 {offsets = [0, 2], sizes = [4, 46], strides = [1, 1]} : vector<4x48xf32> to vector<4x46xf32>
    %263 = tpu.concatenate %260, %261, %262 in 0 : vector<4x46xf32>, vector<4x46xf32>, vector<4x46xf32> -> vector<12x46xf32>
    %264 = vector.extract_strided_slice %258 {offsets = [0, 48], sizes = [4, 48], strides = [1, 1]} : vector<4x96xf32> to vector<4x48xf32>
    %265 = vector.extract_strided_slice %264 {offsets = [0, 0], sizes = [4, 46], strides = [1, 1]} : vector<4x48xf32> to vector<4x46xf32>
    %266 = vector.extract_strided_slice %264 {offsets = [0, 1], sizes = [4, 46], strides = [1, 1]} : vector<4x48xf32> to vector<4x46xf32>
    %267 = vector.extract_strided_slice %264 {offsets = [0, 2], sizes = [4, 46], strides = [1, 1]} : vector<4x48xf32> to vector<4x46xf32>
    %268 = tpu.concatenate %265, %266, %267 in 0 : vector<4x46xf32>, vector<4x46xf32>, vector<4x46xf32> -> vector<12x46xf32>
    %269 = tpu.concatenate %263, %268 in 1 : vector<12x46xf32>, vector<12x46xf32> -> vector<12x92xf32>
    %cst_77 = arith.constant dense<0.000000e+00> : vector<2x92xf32>
    %270 = tpu.matmul %253, %269, %cst_77 {dimension_numbers = #tpu.dot_dimension_numbers<[1], [0], [0], [1], [0, 0, 1, 1], [], []>} : vector<2x12xf32>, vector<12x92xf32>, vector<2x92xf32> -> vector<2x92xf32>
    %271 = vector.broadcast %254 : vector<2x1xf32> to vector<2x92xf32>
    %272 = arith.addf %270, %271 : vector<2x92xf32>
    %273 = math.absf %272 : vector<2x92xf32>
    %cst_78 = arith.constant 0.000000e+00 : f32
    %274 = vector.broadcast %cst_78 : f32 to vector<2x92xf32>
    %275 = arith.subf %274, %273 : vector<2x92xf32>
    %276 = math.exp %275 : vector<2x92xf32>
    %cst_79 = arith.constant 1.000000e+00 : f32
    %277 = vector.broadcast %cst_79 : f32 to vector<2x92xf32>
    %278 = arith.addf %277, %276 : vector<2x92xf32>
    %cst_80 = arith.constant 1.000000e+00 : f32
    %279 = vector.broadcast %cst_80 : f32 to vector<2x92xf32>
    %280 = arith.divf %279, %278 : vector<2x92xf32>
    %cst_81 = arith.constant 0.000000e+00 : f32
    %281 = vector.broadcast %cst_81 : f32 to vector<2x92xf32>
    %282 = arith.cmpf oge, %272, %281 : vector<2x92xf32>
    %283 = arith.mulf %276, %280 : vector<2x92xf32>
    %284 = arith.select %282, %280, %283 : vector<2x92xi1>, vector<2x92xf32>
    %285 = arith.mulf %272, %284 : vector<2x92xf32>
    %286 = vector.extract_strided_slice %285 {offsets = [0, 0], sizes = [1, 92], strides = [1, 1]} : vector<2x92xf32> to vector<1x92xf32>
    %287 = tpu.iota {dimensions = array<i32: 0>} : vector<92x184xi32>
    %288 = tpu.iota {dimensions = array<i32: 1>} : vector<92x184xi32>
    %c2_i32_82 = arith.constant 2 : i32
    %289 = vector.broadcast %c2_i32_82 : i32 to vector<92x184xi32>
    %290 = arith.muli %289, %287 : vector<92x184xi32>
    %c0_i32_83 = arith.constant 0 : i32
    %291 = vector.broadcast %c0_i32_83 : i32 to vector<92x184xi32>
    %292 = arith.addi %290, %291 : vector<92x184xi32>
    %293 = arith.cmpi eq, %288, %292 : vector<92x184xi32>
    %294 = arith.extui %293 : vector<92x184xi1> to vector<92x184xi32>
    %295 = arith.sitofp %294 : vector<92x184xi32> to vector<92x184xf32>
    %cst_84 = arith.constant dense<0.000000e+00> : vector<1x184xf32>
    %296 = tpu.matmul %286, %295, %cst_84 {dimension_numbers = #tpu.dot_dimension_numbers<[1], [0], [0], [1], [0, 0, 1, 1], [], []>} : vector<1x92xf32>, vector<92x184xf32>, vector<1x184xf32> -> vector<1x184xf32>
    %297 = vector.extract_strided_slice %285 {offsets = [1, 0], sizes = [1, 92], strides = [1, 1]} : vector<2x92xf32> to vector<1x92xf32>
    %298 = tpu.iota {dimensions = array<i32: 0>} : vector<92x184xi32>
    %299 = tpu.iota {dimensions = array<i32: 1>} : vector<92x184xi32>
    %c2_i32_85 = arith.constant 2 : i32
    %300 = vector.broadcast %c2_i32_85 : i32 to vector<92x184xi32>
    %301 = arith.muli %300, %298 : vector<92x184xi32>
    %c1_i32_86 = arith.constant 1 : i32
    %302 = vector.broadcast %c1_i32_86 : i32 to vector<92x184xi32>
    %303 = arith.addi %301, %302 : vector<92x184xi32>
    %304 = arith.cmpi eq, %299, %303 : vector<92x184xi32>
    %305 = arith.extui %304 : vector<92x184xi1> to vector<92x184xi32>
    %306 = arith.sitofp %305 : vector<92x184xi32> to vector<92x184xf32>
    %cst_87 = arith.constant dense<0.000000e+00> : vector<1x184xf32>
    %307 = tpu.matmul %297, %306, %cst_87 {dimension_numbers = #tpu.dot_dimension_numbers<[1], [0], [0], [1], [0, 0, 1, 1], [], []>} : vector<1x92xf32>, vector<92x184xf32>, vector<1x184xf32> -> vector<1x184xf32>
    %308 = arith.addf %296, %307 : vector<1x184xf32>
    %309 = vector.extract_strided_slice %308 {offsets = [0, 0], sizes = [1, 92], strides = [1, 1]} : vector<1x184xf32> to vector<1x92xf32>
    %c0_88 = arith.constant 0 : index
    %c0_89 = arith.constant 0 : index
    %c0_90 = arith.constant 0 : index
    %310 = vector.load %arg15[%c0_88, %c0_89, %c0_90] : memref<2x1x92xf32, #tpu.memory_space<vmem>>, vector<1x1x92xf32>
    %311 = vector.shape_cast %310 : vector<1x1x92xf32> to vector<1x92xf32>
    %312 = vector.shape_cast %309 : vector<1x92xf32> to vector<1x1x92xf32>
    tpu.vector_store %arg15[%c0_88, %c0_89, %c0_90], %312 {strides = array<i32>} : memref<2x1x92xf32, #tpu.memory_space<vmem>>, vector<1x1x92xf32>,
    %313 = vector.extract_strided_slice %308 {offsets = [0, 92], sizes = [1, 92], strides = [1, 1]} : vector<1x184xf32> to vector<1x92xf32>
    %c1_91 = arith.constant 1 : index
    %c0_92 = arith.constant 0 : index
    %c0_93 = arith.constant 0 : index
    %314 = vector.load %arg15[%c1_91, %c0_92, %c0_93] : memref<2x1x92xf32, #tpu.memory_space<vmem>>, vector<1x1x92xf32>
    %315 = vector.shape_cast %314 : vector<1x1x92xf32> to vector<1x92xf32>
    %316 = vector.shape_cast %313 : vector<1x92xf32> to vector<1x1x92xf32>
    tpu.vector_store %arg15[%c1_91, %c0_92, %c0_93], %316 {strides = array<i32>} : memref<2x1x92xf32, #tpu.memory_space<vmem>>, vector<1x1x92xf32>,
    return
  }
}

</mosaic_0001>

<llo_original>
// kernel: de_cov_forward.1
$region0: #{de_cov_forward.1}
  #allocation0 [shape = 'u32[]', space=smem, size = 0x4, offset = 0x4, fixed_abs, tag = 'smem constant byte address 0x4 - core index']
  #allocation1 [shape = 'u32[72,128]{1,0:T(1,128)}', space=vmem, size = 0x9000, scoped, tag = 'internal scratch']
  %s0 = inlined_call_operand.vmem [shape: f32[2,12,8], index: 0, kind: input, shape index: {}]
  %s1 = inlined_call_operand.vmem [shape: f32[16,36], index: 1, kind: input, shape index: {}]
  %s2 = inlined_call_operand.vmem [shape: f32[16,1], index: 2, kind: input, shape index: {}]
  %s3 = inlined_call_operand.vmem [shape: f32[8,24], index: 3, kind: input, shape index: {}]
  %s4 = inlined_call_operand.vmem [shape: f32[8,1], index: 4, kind: input, shape index: {}]
  %s5 = inlined_call_operand.vmem [shape: f32[8,24], index: 5, kind: input, shape index: {}]
  %s6 = inlined_call_operand.vmem [shape: f32[8,1], index: 6, kind: input, shape index: {}]
  %s7 = inlined_call_operand.vmem [shape: f32[8,24], index: 7, kind: input, shape index: {}]
  %s8 = inlined_call_operand.vmem [shape: f32[8,1], index: 8, kind: input, shape index: {}]
  %s9 = inlined_call_operand.vmem [shape: f32[4,12], index: 9, kind: input, shape index: {}]
  %s10 = inlined_call_operand.vmem [shape: f32[4,1], index: 10, kind: input, shape index: {}]
  %s11 = inlined_call_operand.vmem [shape: f32[4,12], index: 11, kind: input, shape index: {}]
  %s12 = inlined_call_operand.vmem [shape: f32[4,1], index: 12, kind: input, shape index: {}]
  %s13 = inlined_call_operand.vmem [shape: f32[2,12], index: 13, kind: input, shape index: {}]
  %s14 = inlined_call_operand.vmem [shape: f32[2,1], index: 14, kind: input, shape index: {}]
  %s15 = inlined_call_operand.hbm [shape: f32[2,1,92], index: 15, kind: output, shape index: {}]
  %s16 = sld [smem:[#allocation0]]
  $region70: #{de_cov_forward.1} parent=0
    _
  %s18 = ssub.s32 1, %s16
  %s19 = scalar_select 0, %s18, %s16
  $region1: #{de_cov_forward.1} parent=0
    #allocation2 [shape = 'u8[1024]{0}', space=vmem, size = 0x400, scoped, tag = 'output window, operand 0, single buffered']
    #allocation3 [shape = 's32[1]{0}', space=sflag, size = 0x4, scoped, tag = 'scoped memory for de_cov_forward.1']
    %20 = vsyncpa [#allocation3], 0
    // Predicated region
    $region2: #{de_cov_forward.1} parent=1 // pred_check
      _
    $region3: #{de_cov_forward.1} parent=1 // pred_check_branch
      %22 = sbr.rel (0) target = $region5
    $region4: #{de_cov_forward.1} parent=1 // pred_region
      _
    $region5: #{de_cov_forward.1} parent=1 // pred_fallthru
      _
    // Predicated region
    $region6: #{de_cov_forward.1} parent=1 // pred_check
      _
    $region7: #{de_cov_forward.1} parent=1 // pred_check_branch
      %24 = sbr.rel (0) target = $region9
    $region8: #{de_cov_forward.1} parent=1 // pred_region
      _
    $region9: #{de_cov_forward.1} parent=1 // pred_fallthru
      _
    // Predicated region
    $region10: #{de_cov_forward.1} parent=1 // pred_check
      _
    $region11: #{de_cov_forward.1} parent=1 // pred_check_branch
      %26 = sbr.rel (0) target = $region13
    $region12: #{de_cov_forward.1} parent=1 // pred_region
      _
    $region13: #{de_cov_forward.1} parent=1 // pred_fallthru
      _
    // Predicated region
    $region14: #{de_cov_forward.1} parent=1 // pred_check
      _
    $region15: #{de_cov_forward.1} parent=1 // pred_check_branch
      %28 = sbr.rel (0) target = $region17
    $region16: #{de_cov_forward.1} parent=1 // pred_region
      _
    $region17: #{de_cov_forward.1} parent=1 // pred_fallthru
      _
    // Predicated region
    $region18: #{de_cov_forward.1} parent=1 // pred_check
      _
    $region19: #{de_cov_forward.1} parent=1 // pred_check_branch
      %30 = sbr.rel (0) target = $region21
    $region20: #{de_cov_forward.1} parent=1 // pred_region
      _
    $region21: #{de_cov_forward.1} parent=1 // pred_fallthru
      _
    // Predicated region
    $region22: #{de_cov_forward.1} parent=1 // pred_check
      _
    $region23: #{de_cov_forward.1} parent=1 // pred_check_branch
      %32 = sbr.rel (0) target = $region25
    $region24: #{de_cov_forward.1} parent=1 // pred_region
      _
    $region25: #{de_cov_forward.1} parent=1 // pred_fallthru
      _
    // Predicated region
    $region26: #{de_cov_forward.1} parent=1 // pred_check
      _
    $region27: #{de_cov_forward.1} parent=1 // pred_check_branch
      %34 = sbr.rel (0) target = $region29
    $region28: #{de_cov_forward.1} parent=1 // pred_region
      _
    $region29: #{de_cov_forward.1} parent=1 // pred_fallthru
      _
    // Predicated region
    $region30: #{de_cov_forward.1} parent=1 // pred_check
      _
    $region31: #{de_cov_forward.1} parent=1 // pred_check_branch
      %36 = sbr.rel (0) target = $region33
    $region32: #{de_cov_forward.1} parent=1 // pred_region
      _
    $region33: #{de_cov_forward.1} parent=1 // pred_fallthru
      _
    // Predicated region
    $region34: #{de_cov_forward.1} parent=1 // pred_check
      _
    $region35: #{de_cov_forward.1} parent=1 // pred_check_branch
      %38 = sbr.rel (0) target = $region37
    $region36: #{de_cov_forward.1} parent=1 // pred_region
      _
    $region37: #{de_cov_forward.1} parent=1 // pred_fallthru
      _
    // Predicated region
    $region38: #{de_cov_forward.1} parent=1 // pred_check
      _
    $region39: #{de_cov_forward.1} parent=1 // pred_check_branch
      %40 = sbr.rel (0) target = $region41
    $region40: #{de_cov_forward.1} parent=1 // pred_region
      _
    $region41: #{de_cov_forward.1} parent=1 // pred_fallthru
      _
    // Predicated region
    $region42: #{de_cov_forward.1} parent=1 // pred_check
      _
    $region43: #{de_cov_forward.1} parent=1 // pred_check_branch
      %42 = sbr.rel (0) target = $region45
    $region44: #{de_cov_forward.1} parent=1 // pred_region
      _
    $region45: #{de_cov_forward.1} parent=1 // pred_fallthru
      _
    // Predicated region
    $region46: #{de_cov_forward.1} parent=1 // pred_check
      _
    $region47: #{de_cov_forward.1} parent=1 // pred_check_branch
      %44 = sbr.rel (0) target = $region49
    $region48: #{de_cov_forward.1} parent=1 // pred_region
      _
    $region49: #{de_cov_forward.1} parent=1 // pred_fallthru
      _
    // Predicated region
    $region50: #{de_cov_forward.1} parent=1 // pred_check
      _
    $region51: #{de_cov_forward.1} parent=1 // pred_check_branch
      %46 = sbr.rel (0) target = $region53
    $region52: #{de_cov_forward.1} parent=1 // pred_region
      _
    $region53: #{de_cov_forward.1} parent=1 // pred_fallthru
      _
    // Predicated region
    $region54: #{de_cov_forward.1} parent=1 // pred_check
      _
    $region55: #{de_cov_forward.1} parent=1 // pred_check_branch
      %48 = sbr.rel (0) target = $region57
    $region56: #{de_cov_forward.1} parent=1 // pred_region
      _
    $region57: #{de_cov_forward.1} parent=1 // pred_fallthru
      _
    // Predicated region
    $region58: #{de_cov_forward.1} parent=1 // pred_check
      _
    $region59: #{de_cov_forward.1} parent=1 // pred_check_branch
      %50 = sbr.rel (0) target = $region61
    $region60: #{de_cov_forward.1} parent=1 // pred_region
      _
    $region61: #{de_cov_forward.1} parent=1 // pred_fallthru
      _
    %v51 = vld [vmem:[%s0] sm:$0xff]
    %v52 = vld [vmem:[%s0 + $0x8] sm:$0xf]
    %s53 = scalar_lea.vmem %s0, 16
    %v54 = vld [vmem:[%s53] sm:$0xff]
    %v55 = vld [vmem:[%s53 + $0x8] sm:$0xf]
    %58 = vrot.lane.b32.xlu0 %v54, 8
    %v59 = vpop.permute.xlu0 %58
    %60 = vrot.lane.b32.xlu0 %v55, 8
    %v61 = vpop.permute.xlu0 %60
    %vm64 = vcmask 64512
    %v65 = vsel %vm64, %v51, %v59
    %v66 = vsel %vm64, %v52, %v61
    %v67 = vld [vmem:[%s1] sm:$0xff]
    %v68 = vld [vmem:[%s1 + $0x8] sm:$0xff]
    %v69 = vld [vmem:[%s2] sm:$0xff]
    %v70 = vld [vmem:[%s2 + $0x8] sm:$0xff]
    %73 = vrot.lane.b32.xlu0 %v65, 2
    %v74 = vpop.permute.xlu0 %73
    %75 = vrot.lane.b32.xlu0 %v66, 2
    %v76 = vpop.permute.xlu0 %75
    %79 = vrot.lane.b32.xlu0 %v65, 6
    %v80 = vpop.permute.xlu0 %79
    %81 = vrot.lane.b32.xlu0 %v66, 6
    %v82 = vpop.permute.xlu0 %81
    %vm85 = vcmask 15360
    %v86 = vsel %vm85, 0.0, %v74
    %v87 = vsel %vm85, 0.0, %v76
    %vm88 = vcmask 80896
    %v89 = vsel %vm88, %v86, 0.0
    %v90 = vsel %vm88, %v87, 0.0
    %vm91 = vcmask 97280
    %v92 = vsel %vm91, %v89, 0.0
    %v93 = vsel %vm91, %v90, 0.0
    %vm94 = vcmask 113664
    %v95 = vsel %vm94, %v92, %v80
    %v96 = vsel %vm94, %v93, %v82
    %vm97 = vcmask 179200
    %v98 = vsel %vm97, %v95, 0.0
    %v99 = vsel %vm97, %v96, 0.0
    %vm102 = vcmask 1043456
    %v103 = vrot.slane %v98, 4
    %v104 = vrot.slane %v99, 4
    %v105 = vsel %vm102, %v103, %v104
    %106 = vrot.lane.b32.xlu0 %v103, 127
    %v107 = vpop.permute.xlu0 %106
    %108 = vrot.lane.b32.xlu0 %v105, 127
    %v109 = vpop.permute.xlu0 %108
    %112 = vrot.lane.b32.xlu0 %v98, 126
    %v113 = vpop.permute.xlu0 %112
    %114 = vrot.lane.b32.xlu0 %v99, 126
    %v115 = vpop.permute.xlu0 %114
    %v118 = vsel %vm102, %v99, %v107
    %120 = vrot.lane.b32.xlu0 %v118, 126
    %v121 = vpop.permute.xlu0 %120
    %122 = vrot.lane.b32.xlu0 %v109, 126
    %v123 = vpop.permute.xlu0 %122
    %124 = vrot.lane.b32.xlu0 %v113, 126
    %v125 = vpop.permute.xlu0 %124
    %126 = vrot.lane.b32.xlu0 %v115, 126
    %v127 = vpop.permute.xlu0 %126
    %v132 = vsel %vm88, %v98, %v113
    %v133 = vsel %vm88, %v118, %v121
    %v134 = vsel %vm88, %v109, %v123
    %v135 = vsel %vm88, %v113, %v125
    %v136 = vsel %vm88, %v115, %v127
    %138 = vset.pattern.permute.xlu0 0
    %139 = vperm.xlu0 %138, %v69
    %v140 = vpop.permute.xlu0 %139
    %143 = vset.pattern.permute.xlu0 0
    %144 = vperm.xlu0 %143, %v70
    %v145 = vpop.permute.xlu0 %144
    %vm147 = vcmask 293888
    %v149 = vsel %vm147, %v67, 0
    %v152 = vsel %vm147, %v68, 0
    %v155 = vsel %vm102, %v136, 0
    %157 = vmatpush.msra.mxu0 0.0
    %158 = vmatpush.msra.mxu0 0.0
    %159 = vmatpush.msra.mxu0 0.0
    %160 = vmatpush.msra.mxu0 0.0
    %161 = vmatpush.msra.mxu0 0.0
    %162 = vmatpush.msra.mxu0 0.0
    %163 = vmatpush.msra.mxu0 0.0
    %164 = vmatpush.msra.mxu0 0.0
    %165 = vmatpush.msra.mxu0 0.0
    %166 = vmatpush.msra.mxu0 0.0
    %167 = vmatpush.msra.mxu0 0.0
    %168 = vmatpush.msra.mxu0 %v155
    %169 = vmatpush.msra.mxu0 %v135
    %170 = vmatpush.msra.mxu0 %v134
    %171 = vmatpush.msra.mxu0 %v133
    %172 = vmatpush.msra.mxu0 %v132
    %173 = vmatmul.f32.gmra.mxu0 %v149
    %v174 = vpop.f32.mrf.mxu0
    %v175 = vadd.f32 %v140, %v174
    %176 = vmatmul.f32.gmra.mxu0 %v152
    %v177 = vpop.f32.mrf.mxu0
    %v178 = vadd.f32 %v145, %v177
    %179 = vdwg.mxu0
    %v180 = vand.u32 2147483647, %v175
    %v181 = vand.u32 2147483647, %v178
    %v182 = vsub.f32 0.0, %v180
    %v183 = vsub.f32 0.0, %v181
    %v184 = vmul.f32 %v182, 1.442695
    %v185 = vpow.pop %v184
    %v186 = vmul.f32 %v183, 1.442695
    %v187 = vpow.pop %v186
    %v188 = vadd.f32 %v185, 1.0
    %v189 = vadd.f32 %v187, 1.0
    %v190 = vrcp.pop %v188
    %v191 = vmul.f32 %v188, %v190
    %v192 = vsub.f32 1.0, %v191
    %v193 = vmul.f32 %v190, %v192
    %v194 = vadd.f32 %v190, %v193
    %vm195 = vweird.f32 %v188
    %vm196 = vweird.f32 %v190
    %vm197 = vmor %vm195, %vm196
    %v198 = vsel %vm197, %v190, %v194
    %v199 = vand.u32 2147483647, %v188
    %vm200 = vcmp.eq.f32.partialorder %v199, 8.507059e+37
    %v201 = vand.u32 %v188, 2147483648
    %v202 = vor.u32 1.1754944e-38, %v201
    %v203 = vsel %vm200, %v202, %v198
    %v204 = vmul.f32 1.0, %v203
    %v205 = vrcp.pop %v189
    %v206 = vmul.f32 %v189, %v205
    %v207 = vsub.f32 1.0, %v206
    %v208 = vmul.f32 %v205, %v207
    %v209 = vadd.f32 %v205, %v208
    %vm210 = vweird.f32 %v189
    %vm211 = vweird.f32 %v205
    %vm212 = vmor %vm210, %vm211
    %v213 = vsel %vm212, %v205, %v209
    %v214 = vand.u32 2147483647, %v189
    %vm215 = vcmp.eq.f32.partialorder %v214, 8.507059e+37
    %v216 = vand.u32 %v189, 2147483648
    %v217 = vor.u32 1.1754944e-38, %v216
    %v218 = vsel %vm215, %v217, %v213
    %v219 = vmul.f32 1.0, %v218
    %vm220 = vcmp.ge.f32.partialorder %v175, 0.0
    %vm221 = vcmp.ge.f32.partialorder %v178, 0.0
    %v222 = vmul.f32 %v185, %v204
    %v223 = vmul.f32 %v187, %v219
    %v224 = vsel %vm220, %v204, %v222
    %v225 = vsel %vm221, %v219, %v223
    %v226 = vmul.f32 %v175, %v224
    %v227 = vmul.f32 %v178, %v225
    %v228 = vlaneseq
    %v229 = vshrl.u32 %v228, 7
    %v230 = vadd.s32 %v229, 8
    %v231 = vadd.s32 %v229, 16
    %v232 = vlaneseq
    %v233 = vand.u32 %v232, 127
    %v234 = vmul.u32 %v229, 2
    %v235 = vmul.u32 %v230, 2
    %v236 = vmul.u32 %v231, 2
    %vm237 = vcmp.eq.s32.totalorder %v233, %v234
    %vm238 = vcmp.eq.s32.totalorder %v233, %v235
    %vm239 = vcmp.eq.s32.totalorder %v233, %v236
    %v240 = vsel %vm237, 1, 0
    %v241 = vsel %vm238, 1, 0
    %v242 = vsel %vm239, 1, 0
    %v243 = vcvt.s32.f32 %v240
    %v244 = vcvt.s32.f32 %v241
    %v245 = vcvt.s32.f32 %v242
    %v246 = vadd.s32 %v234, 1
    %v247 = vadd.s32 %v235, 1
    %v248 = vadd.s32 %v236, 1
    %vm249 = vcmp.eq.s32.totalorder %v233, %v246
    %vm250 = vcmp.eq.s32.totalorder %v233, %v247
    %vm251 = vcmp.eq.s32.totalorder %v233, %v248
    %v252 = vsel %vm249, 1, 0
    %v253 = vsel %vm250, 1, 0
    %v254 = vsel %vm251, 1, 0
    %v255 = vcvt.s32.f32 %v252
    %v256 = vcvt.s32.f32 %v253
    %v257 = vcvt.s32.f32 %v254
    %vm258 = vcmask 162816
    %v260 = vsel %vm258, %v227, 0
    %v263 = vsel %vm102, %v257, 0
    %265 = vmatpush.msra.mxu0 0.0
    %266 = vmatpush.msra.mxu0 0.0
    %267 = vmatpush.msra.mxu0 0.0
    %268 = vmatpush.msra.mxu0 0.0
    %269 = vmatpush.msra.mxu0 0.0
    %270 = vmatpush.msra.mxu0 0.0
    %271 = vmatpush.msra.mxu0 0.0
    %272 = vmatpush.msra.mxu0 0.0
    %273 = vmatpush.msra.mxu0 0.0
    %274 = vmatpush.msra.mxu0 0.0
    %275 = vmatpush.msra.mxu0 0.0
    %276 = vmatpush.msra.mxu0 0.0
    %277 = vmatpush.msra.mxu0 0.0
    %278 = vmatpush.msra.mxu0 %v263
    %279 = vmatpush.msra.mxu0 %v256
    %280 = vmatpush.msra.mxu0 %v255
    %281 = vmatmul.f32.gmra.mxu0 %v260
    %v282 = vpop.f32.mrf.mxu0
    %v283 = vadd.f32 0.0, %v282
    %284 = vdwg.mxu0
    %v286 = vsel %vm258, %v226, 0
    %v289 = vsel %vm102, %v245, 0
    %291 = vmatpush.msra.mxu0 0.0
    %292 = vmatpush.msra.mxu0 0.0
    %293 = vmatpush.msra.mxu0 0.0
    %294 = vmatpush.msra.mxu0 0.0
    %295 = vmatpush.msra.mxu0 0.0
    %296 = vmatpush.msra.mxu0 0.0
    %297 = vmatpush.msra.mxu0 0.0
    %298 = vmatpush.msra.mxu0 0.0
    %299 = vmatpush.msra.mxu0 0.0
    %300 = vmatpush.msra.mxu0 0.0
    %301 = vmatpush.msra.mxu0 0.0
    %302 = vmatpush.msra.mxu0 0.0
    %303 = vmatpush.msra.mxu0 0.0
    %304 = vmatpush.msra.mxu0 %v289
    %305 = vmatpush.msra.mxu0 %v244
    %306 = vmatpush.msra.mxu0 %v243
    %307 = vmatmul.f32.gmra.mxu0 %v286
    %v308 = vpop.f32.mrf.mxu0
    %v309 = vadd.f32 %v283, %v308
    %310 = vdwg.mxu0
    %v311 = vld [vmem:[%s3] sm:$0xff]
    %v312 = vld [vmem:[%s4] sm:$0xff]
    %314 = vrot.lane.b32.xlu0 %v309, 1
    %v315 = vpop.permute.xlu0 %314
    %317 = vrot.lane.b32.xlu0 %v309, 3
    %v318 = vpop.permute.xlu0 %317
    %vm320 = vcmask 7168
    %v321 = vsel %vm320, 0.0, %v315
    %vm322 = vcmask 171008
    %v323 = vsel %vm322, %v321, 0.0
    %v324 = vsel %vm97, %v323, 0.0
    %vm325 = vcmask 187392
    %v326 = vsel %vm325, %v324, %v318
    %vm327 = vcmask 351232
    %v328 = vsel %vm327, %v326, 0.0
    %330 = vrot.lane.b32.xlu0 %v328, 127
    %v331 = vpop.permute.xlu0 %330
    %333 = vrot.lane.b32.xlu0 %v328, 126
    %v334 = vpop.permute.xlu0 %333
    %336 = vrot.lane.b32.xlu0 %v331, 126
    %v337 = vpop.permute.xlu0 %336
    %338 = vrot.lane.b32.xlu0 %v334, 126
    %v339 = vpop.permute.xlu0 %338
    %v342 = vsel %vm258, %v328, %v334
    %v343 = vsel %vm258, %v331, %v337
    %v344 = vsel %vm258, %v334, %v339
    %346 = vset.pattern.permute.xlu0 0
    %347 = vperm.xlu0 %346, %v312
    %v348 = vpop.permute.xlu0 %347
    %vm350 = vcmask 195584
    %v352 = vsel %vm350, %v311, 0
    %354 = vmatpush.msra.mxu0 0.0
    %355 = vmatpush.msra.mxu0 0.0
    %356 = vmatpush.msra.mxu0 0.0
    %357 = vmatpush.msra.mxu0 0.0
    %358 = vmatpush.msra.mxu0 0.0
    %359 = vmatpush.msra.mxu0 0.0
    %360 = vmatpush.msra.mxu0 0.0
    %361 = vmatpush.msra.mxu0 0.0
    %362 = vmatpush.msra.mxu0 0.0
    %363 = vmatpush.msra.mxu0 0.0
    %364 = vmatpush.msra.mxu0 0.0
    %365 = vmatpush.msra.mxu0 0.0
    %366 = vmatpush.msra.mxu0 0.0
    %367 = vmatpush.msra.mxu0 %v344
    %368 = vmatpush.msra.mxu0 %v343
    %369 = vmatpush.msra.mxu0 %v342
    %370 = vmatmul.f32.gmra.mxu0 %v352
    %v371 = vpop.f32.mrf.mxu0
    %v372 = vadd.f32 %v348, %v371
    %373 = vdwg.mxu0
    %v374 = vand.u32 2147483647, %v372
    %v375 = vsub.f32 0.0, %v374
    %v376 = vmul.f32 %v375, 1.442695
    %v377 = vpow.pop %v376
    %v378 = vadd.f32 %v377, 1.0
    %v379 = vrcp.pop %v378
    %v380 = vmul.f32 %v378, %v379
    %v381 = vsub.f32 1.0, %v380
    %v382 = vmul.f32 %v379, %v381
    %v383 = vadd.f32 %v379, %v382
    %vm384 = vweird.f32 %v378
    %vm385 = vweird.f32 %v379
    %vm386 = vmor %vm384, %vm385
    %v387 = vsel %vm386, %v379, %v383
    %v388 = vand.u32 2147483647, %v378
    %vm389 = vcmp.eq.f32.partialorder %v388, 8.507059e+37
    %v390 = vand.u32 %v378, 2147483648
    %v391 = vor.u32 1.1754944e-38, %v390
    %v392 = vsel %vm389, %v391, %v387
    %v393 = vmul.f32 1.0, %v392
    %vm394 = vcmp.ge.f32.partialorder %v372, 0.0
    %v395 = vmul.f32 %v377, %v393
    %v396 = vsel %vm394, %v393, %v395
    %v397 = vmul.f32 %v372, %v396
    %v398 = vadd.f32 %v309, %v397
    %v399 = vld [vmem:[%s5] sm:$0xff]
    %v400 = vld [vmem:[%s6] sm:$0xff]
    %402 = vrot.lane.b32.xlu0 %v398, 1
    %v403 = vpop.permute.xlu0 %402
    %405 = vrot.lane.b32.xlu0 %v398, 3
    %v406 = vpop.permute.xlu0 %405
    %v408 = vsel %vm320, 0.0, %v403
    %v409 = vsel %vm322, %v408, 0.0
    %v410 = vsel %vm97, %v409, 0.0
    %v411 = vsel %vm325, %v410, %v406
    %v412 = vsel %vm327, %v411, 0.0
    %414 = vrot.lane.b32.xlu0 %v412, 127
    %v415 = vpop.permute.xlu0 %414
    %417 = vrot.lane.b32.xlu0 %v412, 126
    %v418 = vpop.permute.xlu0 %417
    %420 = vrot.lane.b32.xlu0 %v415, 126
    %v421 = vpop.permute.xlu0 %420
    %422 = vrot.lane.b32.xlu0 %v418, 126
    %v423 = vpop.permute.xlu0 %422
    %v426 = vsel %vm258, %v412, %v418
    %v427 = vsel %vm258, %v415, %v421
    %v428 = vsel %vm258, %v418, %v423
    %430 = vset.pattern.permute.xlu0 0
    %431 = vperm.xlu0 %430, %v400
    %v432 = vpop.permute.xlu0 %431
    %v435 = vsel %vm350, %v399, 0
    %437 = vmatpush.msra.mxu0 0.0
    %438 = vmatpush.msra.mxu0 0.0
    %439 = vmatpush.msra.mxu0 0.0
    %440 = vmatpush.msra.mxu0 0.0
    %441 = vmatpush.msra.mxu0 0.0
    %442 = vmatpush.msra.mxu0 0.0
    %443 = vmatpush.msra.mxu0 0.0
    %444 = vmatpush.msra.mxu0 0.0
    %445 = vmatpush.msra.mxu0 0.0
    %446 = vmatpush.msra.mxu0 0.0
    %447 = vmatpush.msra.mxu0 0.0
    %448 = vmatpush.msra.mxu0 0.0
    %449 = vmatpush.msra.mxu0 0.0
    %450 = vmatpush.msra.mxu0 %v428
    %451 = vmatpush.msra.mxu0 %v427
    %452 = vmatpush.msra.mxu0 %v426
    %453 = vmatmul.f32.gmra.mxu0 %v435
    %v454 = vpop.f32.mrf.mxu0
    %v455 = vadd.f32 %v432, %v454
    %456 = vdwg.mxu0
    %v457 = vand.u32 2147483647, %v455
    %v458 = vsub.f32 0.0, %v457
    %v459 = vmul.f32 %v458, 1.442695
    %v460 = vpow.pop %v459
    %v461 = vadd.f32 %v460, 1.0
    %v462 = vrcp.pop %v461
    %v463 = vmul.f32 %v461, %v462
    %v464 = vsub.f32 1.0, %v463
    %v465 = vmul.f32 %v462, %v464
    %v466 = vadd.f32 %v462, %v465
    %vm467 = vweird.f32 %v461
    %vm468 = vweird.f32 %v462
    %vm469 = vmor %vm467, %vm468
    %v470 = vsel %vm469, %v462, %v466
    %v471 = vand.u32 2147483647, %v461
    %vm472 = vcmp.eq.f32.partialorder %v471, 8.507059e+37
    %v473 = vand.u32 %v461, 2147483648
    %v474 = vor.u32 1.1754944e-38, %v473
    %v475 = vsel %vm472, %v474, %v470
    %v476 = vmul.f32 1.0, %v475
    %vm477 = vcmp.ge.f32.partialorder %v455, 0.0
    %v478 = vmul.f32 %v460, %v476
    %v479 = vsel %vm477, %v476, %v478
    %v480 = vmul.f32 %v455, %v479
    %v481 = vadd.f32 %v398, %v480
    %v482 = vld [vmem:[%s7] sm:$0xff]
    %v483 = vld [vmem:[%s8] sm:$0xff]
    %485 = vrot.lane.b32.xlu0 %v481, 2
    %v486 = vpop.permute.xlu0 %485
    %488 = vrot.lane.b32.xlu0 %v481, 6
    %v489 = vpop.permute.xlu0 %488
    %v491 = vsel %vm85, 0.0, %v486
    %v492 = vsel %vm97, %v491, 0.0
    %v493 = vsel %vm350, %v492, 0.0
    %vm494 = vcmask 211968
    %v495 = vsel %vm494, %v493, %v489
    %vm496 = vcmask 375808
    %v497 = vsel %vm496, %v495, 0.0
    %499 = vrot.lane.b32.xlu0 %v497, 127
    %v500 = vpop.permute.xlu0 %499
    %502 = vrot.lane.b32.xlu0 %v497, 126
    %v503 = vpop.permute.xlu0 %502
    %505 = vrot.lane.b32.xlu0 %v500, 126
    %v506 = vpop.permute.xlu0 %505
    %507 = vrot.lane.b32.xlu0 %v503, 126
    %v508 = vpop.permute.xlu0 %507
    %v511 = vsel %vm97, %v497, %v503
    %v512 = vsel %vm97, %v500, %v506
    %v513 = vsel %vm97, %v503, %v508
    %515 = vset.pattern.permute.xlu0 0
    %516 = vperm.xlu0 %515, %v483
    %v517 = vpop.permute.xlu0 %516
    %v520 = vsel %vm350, %v482, 0
    %522 = vmatpush.msra.mxu0 0.0
    %523 = vmatpush.msra.mxu0 0.0
    %524 = vmatpush.msra.mxu0 0.0
    %525 = vmatpush.msra.mxu0 0.0
    %526 = vmatpush.msra.mxu0 0.0
    %527 = vmatpush.msra.mxu0 0.0
    %528 = vmatpush.msra.mxu0 0.0
    %529 = vmatpush.msra.mxu0 0.0
    %530 = vmatpush.msra.mxu0 0.0
    %531 = vmatpush.msra.mxu0 0.0
    %532 = vmatpush.msra.mxu0 0.0
    %533 = vmatpush.msra.mxu0 0.0
    %534 = vmatpush.msra.mxu0 0.0
    %535 = vmatpush.msra.mxu0 %v513
    %536 = vmatpush.msra.mxu0 %v512
    %537 = vmatpush.msra.mxu0 %v511
    %538 = vmatmul.f32.gmra.mxu0 %v520
    %v539 = vpop.f32.mrf.mxu0
    %v540 = vadd.f32 %v517, %v539
    %541 = vdwg.mxu0
    %v542 = vand.u32 2147483647, %v540
    %v543 = vsub.f32 0.0, %v542
    %v544 = vmul.f32 %v543, 1.442695
    %v545 = vpow.pop %v544
    %v546 = vadd.f32 %v545, 1.0
    %v547 = vrcp.pop %v546
    %v548 = vmul.f32 %v546, %v547
    %v549 = vsub.f32 1.0, %v548
    %v550 = vmul.f32 %v547, %v549
    %v551 = vadd.f32 %v547, %v550
    %vm552 = vweird.f32 %v546
    %vm553 = vweird.f32 %v547
    %vm554 = vmor %vm552, %vm553
    %v555 = vsel %vm554, %v547, %v551
    %v556 = vand.u32 2147483647, %v546
    %vm557 = vcmp.eq.f32.partialorder %v556, 8.507059e+37
    %v558 = vand.u32 %v546, 2147483648
    %v559 = vor.u32 1.1754944e-38, %v558
    %v560 = vsel %vm557, %v559, %v555
    %v561 = vmul.f32 1.0, %v560
    %vm562 = vcmp.ge.f32.partialorder %v540, 0.0
    %v563 = vmul.f32 %v545, %v561
    %v564 = vsel %vm562, %v561, %v563
    %v565 = vmul.f32 %v540, %v564
    %v566 = vadd.s32 %v229, 24
    %v567 = vadd.s32 %v229, 32
    %v568 = vadd.s32 %v229, 40
    %v569 = vmul.u32 %v566, 2
    %v570 = vmul.u32 %v567, 2
    %v571 = vmul.u32 %v568, 2
    %vm572 = vcmp.eq.s32.totalorder %v233, %v569
    %vm573 = vcmp.eq.s32.totalorder %v233, %v570
    %vm574 = vcmp.eq.s32.totalorder %v233, %v571
    %v575 = vsel %vm572, 1, 0
    %v576 = vsel %vm573, 1, 0
    %v577 = vsel %vm574, 1, 0
    %v578 = vcvt.s32.f32 %v575
    %v579 = vcvt.s32.f32 %v576
    %v580 = vcvt.s32.f32 %v577
    %v581 = vadd.s32 %v569, 1
    %v582 = vadd.s32 %v570, 1
    %v583 = vadd.s32 %v571, 1
    %vm584 = vcmp.eq.s32.totalorder %v233, %v581
    %vm585 = vcmp.eq.s32.totalorder %v233, %v582
    %vm586 = vcmp.eq.s32.totalorder %v233, %v583
    %v587 = vsel %vm584, 1, 0
    %v588 = vsel %vm585, 1, 0
    %v589 = vsel %vm586, 1, 0
    %v590 = vcvt.s32.f32 %v587
    %v591 = vcvt.s32.f32 %v588
    %v592 = vcvt.s32.f32 %v589
    %v594 = vrot.slane %v565, 4
    %vm595 = vcmask 359424
    %v596 = vsel %vm595, %v594, 0
    %v599 = vsel %vm102, %v592, 0
    %601 = vmatpush.msra.mxu0 0.0
    %602 = vmatpush.msra.mxu0 0.0
    %603 = vmatpush.msra.mxu0 0.0
    %604 = vmatpush.msra.mxu0 0.0
    %605 = vmatpush.msra.mxu0 0.0
    %606 = vmatpush.msra.mxu0 0.0
    %607 = vmatpush.msra.mxu0 0.0
    %608 = vmatpush.msra.mxu0 0.0
    %609 = vmatpush.msra.mxu0 0.0
    %610 = vmatpush.msra.mxu0 0.0
    %611 = vmatpush.msra.mxu0 %v599
    %612 = vmatpush.msra.mxu0 %v591
    %613 = vmatpush.msra.mxu0 %v590
    %614 = vmatpush.msra.mxu0 %v257
    %615 = vmatpush.msra.mxu0 %v256
    %616 = vmatpush.msra.mxu0 %v255
    %617 = vmatmul.f32.gmra.mxu0 %v596
    %v618 = vpop.f32.mrf.mxu0
    %v619 = vadd.f32 0.0, %v618
    %620 = vdwg.mxu0
    %v621 = vsel %vm595, %v565, 0
    %v624 = vsel %vm102, %v580, 0
    %626 = vmatpush.msra.mxu0 0.0
    %627 = vmatpush.msra.mxu0 0.0
    %628 = vmatpush.msra.mxu0 0.0
    %629 = vmatpush.msra.mxu0 0.0
    %630 = vmatpush.msra.mxu0 0.0
    %631 = vmatpush.msra.mxu0 0.0
    %632 = vmatpush.msra.mxu0 0.0
    %633 = vmatpush.msra.mxu0 0.0
    %634 = vmatpush.msra.mxu0 0.0
    %635 = vmatpush.msra.mxu0 0.0
    %636 = vmatpush.msra.mxu0 %v624
    %637 = vmatpush.msra.mxu0 %v579
    %638 = vmatpush.msra.mxu0 %v578
    %639 = vmatpush.msra.mxu0 %v245
    %640 = vmatpush.msra.mxu0 %v244
    %641 = vmatpush.msra.mxu0 %v243
    %642 = vmatmul.f32.gmra.mxu0 %v621
    %v643 = vpop.f32.mrf.mxu0
    %v644 = vadd.f32 %v619, %v643
    %645 = vdwg.mxu0
    %v646 = vld [vmem:[%s9] sm:$0xf]
    %v647 = vld [vmem:[%s10] sm:$0xf]
    %649 = vrot.lane.b32.xlu0 %v644, 1
    %v650 = vpop.permute.xlu0 %649
    %652 = vrot.lane.b32.xlu0 %v644, 3
    %v653 = vpop.permute.xlu0 %652
    %v655 = vsel %vm320, 0.0, %v650
    %vm656 = vcmask 367616
    %v657 = vsel %vm656, %v655, 0.0
    %v658 = vsel %vm496, %v657, 0.0
    %vm659 = vcmask 384000
    %v660 = vsel %vm659, %v658, %v653
    %vm661 = vcmask 744448
    %v662 = vsel %vm661, %v660, 0.0
    %v664 = vrot.slane %v662, 4
    %665 = vrot.lane.b32.xlu0 %v664, 127
    %v666 = vpop.permute.xlu0 %665
    %668 = vrot.lane.b32.xlu0 %v662, 126
    %v669 = vpop.permute.xlu0 %668
    %v671 = vsel %vm102, %v662, %v666
    %673 = vrot.lane.b32.xlu0 %v671, 126
    %v674 = vpop.permute.xlu0 %673
    %675 = vrot.lane.b32.xlu0 %v669, 126
    %v676 = vpop.permute.xlu0 %675
    %v679 = vsel %vm595, %v671, %v674
    %v680 = vsel %vm595, %v669, %v676
    %682 = vset.pattern.permute.xlu0 0
    %683 = vperm.xlu0 %682, %v647
    %v684 = vpop.permute.xlu0 %683
    %v687 = vsel %vm91, %v646, 0
    %v690 = vsel %vm102, %v680, 0
    %692 = vmatpush.msra.mxu0 0.0
    %693 = vmatpush.msra.mxu0 0.0
    %694 = vmatpush.msra.mxu0 0.0
    %695 = vmatpush.msra.mxu0 0.0
    %696 = vmatpush.msra.mxu0 0.0
    %697 = vmatpush.msra.mxu0 0.0
    %698 = vmatpush.msra.mxu0 0.0
    %699 = vmatpush.msra.mxu0 0.0
    %700 = vmatpush.msra.mxu0 0.0
    %701 = vmatpush.msra.mxu0 0.0
    %702 = vmatpush.msra.mxu0 0.0
    %703 = vmatpush.msra.mxu0 0.0
    %704 = vmatpush.msra.mxu0 0.0
    %705 = vmatpush.msra.mxu0 0.0
    %706 = vmatpush.msra.mxu0 %v690
    %707 = vmatpush.msra.mxu0 %v679
    %708 = vmatmul.f32.gmra.mxu0 %v687
    %v709 = vpop.f32.mrf.mxu0
    %v710 = vadd.f32 %v684, %v709
    %711 = vdwg.mxu0
    %v712 = vand.u32 2147483647, %v710
    %v713 = vsub.f32 0.0, %v712
    %v714 = vmul.f32 %v713, 1.442695
    %v715 = vpow.pop %v714
    %v716 = vadd.f32 %v715, 1.0
    %v717 = vrcp.pop %v716
    %v718 = vmul.f32 %v716, %v717
    %v719 = vsub.f32 1.0, %v718
    %v720 = vmul.f32 %v717, %v719
    %v721 = vadd.f32 %v717, %v720
    %vm722 = vweird.f32 %v716
    %vm723 = vweird.f32 %v717
    %vm724 = vmor %vm722, %vm723
    %v725 = vsel %vm724, %v717, %v721
    %v726 = vand.u32 2147483647, %v716
    %vm727 = vcmp.eq.f32.partialorder %v726, 8.507059e+37
    %v728 = vand.u32 %v716, 2147483648
    %v729 = vor.u32 1.1754944e-38, %v728
    %v730 = vsel %vm727, %v729, %v725
    %v731 = vmul.f32 1.0, %v730
    %vm732 = vcmp.ge.f32.partialorder %v710, 0.0
    %v733 = vmul.f32 %v715, %v731
    %v734 = vsel %vm732, %v731, %v733
    %v735 = vmul.f32 %v710, %v734
    %v736 = vadd.f32 %v644, %v735
    %v737 = vld [vmem:[%s11] sm:$0xf]
    %v738 = vld [vmem:[%s12] sm:$0xf]
    %740 = vrot.lane.b32.xlu0 %v736, 1
    %v741 = vpop.permute.xlu0 %740
    %743 = vrot.lane.b32.xlu0 %v736, 3
    %v744 = vpop.permute.xlu0 %743
    %v746 = vsel %vm320, 0.0, %v741
    %v747 = vsel %vm656, %v746, 0.0
    %v748 = vsel %vm496, %v747, 0.0
    %v749 = vsel %vm659, %v748, %v744
    %v750 = vsel %vm661, %v749, 0.0
    %v752 = vrot.slane %v750, 4
    %753 = vrot.lane.b32.xlu0 %v752, 127
    %v754 = vpop.permute.xlu0 %753
    %756 = vrot.lane.b32.xlu0 %v750, 126
    %v757 = vpop.permute.xlu0 %756
    %v759 = vsel %vm102, %v750, %v754
    %761 = vrot.lane.b32.xlu0 %v759, 126
    %v762 = vpop.permute.xlu0 %761
    %763 = vrot.lane.b32.xlu0 %v757, 126
    %v764 = vpop.permute.xlu0 %763
    %v767 = vsel %vm595, %v759, %v762
    %v768 = vsel %vm595, %v757, %v764
    %770 = vset.pattern.permute.xlu0 0
    %771 = vperm.xlu0 %770, %v738
    %v772 = vpop.permute.xlu0 %771
    %v775 = vsel %vm91, %v737, 0
    %v778 = vsel %vm102, %v768, 0
    %780 = vmatpush.msra.mxu0 0.0
    %781 = vmatpush.msra.mxu0 0.0
    %782 = vmatpush.msra.mxu0 0.0
    %783 = vmatpush.msra.mxu0 0.0
    %784 = vmatpush.msra.mxu0 0.0
    %785 = vmatpush.msra.mxu0 0.0
    %786 = vmatpush.msra.mxu0 0.0
    %787 = vmatpush.msra.mxu0 0.0
    %788 = vmatpush.msra.mxu0 0.0
    %789 = vmatpush.msra.mxu0 0.0
    %790 = vmatpush.msra.mxu0 0.0
    %791 = vmatpush.msra.mxu0 0.0
    %792 = vmatpush.msra.mxu0 0.0
    %793 = vmatpush.msra.mxu0 0.0
    %794 = vmatpush.msra.mxu0 %v778
    %795 = vmatpush.msra.mxu0 %v767
    %796 = vmatmul.f32.gmra.mxu0 %v775
    %v797 = vpop.f32.mrf.mxu0
    %v798 = vadd.f32 %v772, %v797
    %799 = vdwg.mxu0
    %v800 = vand.u32 2147483647, %v798
    %v801 = vsub.f32 0.0, %v800
    %v802 = vmul.f32 %v801, 1.442695
    %v803 = vpow.pop %v802
    %v804 = vadd.f32 %v803, 1.0
    %v805 = vrcp.pop %v804
    %v806 = vmul.f32 %v804, %v805
    %v807 = vsub.f32 1.0, %v806
    %v808 = vmul.f32 %v805, %v807
    %v809 = vadd.f32 %v805, %v808
    %vm810 = vweird.f32 %v804
    %vm811 = vweird.f32 %v805
    %vm812 = vmor %vm810, %vm811
    %v813 = vsel %vm812, %v805, %v809
    %v814 = vand.u32 2147483647, %v804
    %vm815 = vcmp.eq.f32.partialorder %v814, 8.507059e+37
    %v816 = vand.u32 %v804, 2147483648
    %v817 = vor.u32 1.1754944e-38, %v816
    %v818 = vsel %vm815, %v817, %v813
    %v819 = vmul.f32 1.0, %v818
    %vm820 = vcmp.ge.f32.partialorder %v798, 0.0
    %v821 = vmul.f32 %v803, %v819
    %v822 = vsel %vm820, %v819, %v821
    %v823 = vmul.f32 %v798, %v822
    %v824 = vadd.f32 %v736, %v823
    %v825 = vld [vmem:[%s13] sm:$0x3]
    %v826 = vld [vmem:[%s14] sm:$0x3]
    %828 = vrot.lane.b32.xlu0 %v824, 2
    %v829 = vpop.permute.xlu0 %828
    %831 = vrot.lane.b32.xlu0 %v824, 6
    %v832 = vpop.permute.xlu0 %831
    %v834 = vsel %vm85, 0.0, %v829
    %v835 = vsel %vm496, %v834, 0.0
    %vm836 = vcmask 392192
    %v837 = vsel %vm836, %v835, 0.0
    %vm838 = vcmask 408576
    %v839 = vsel %vm838, %v837, %v832
    %vm840 = vcmask 769024
    %v841 = vsel %vm840, %v839, 0.0
    %v843 = vrot.slane %v841, 4
    %844 = vrot.lane.b32.xlu0 %v843, 127
    %v845 = vpop.permute.xlu0 %844
    %847 = vrot.lane.b32.xlu0 %v841, 126
    %v848 = vpop.permute.xlu0 %847
    %v850 = vsel %vm102, %v841, %v845
    %852 = vrot.lane.b32.xlu0 %v850, 126
    %v853 = vpop.permute.xlu0 %852
    %854 = vrot.lane.b32.xlu0 %v848, 126
    %v855 = vpop.permute.xlu0 %854
    %v858 = vsel %vm496, %v850, %v853
    %v859 = vsel %vm496, %v848, %v855
    %861 = vset.pattern.permute.xlu0 0
    %862 = vperm.xlu0 %861, %v826
    %v863 = vpop.permute.xlu0 %862
    %v866 = vsel %vm91, %v825, 0
    %v869 = vsel %vm102, %v859, 0
    %871 = vmatpush.msra.mxu0 0.0
    %872 = vmatpush.msra.mxu0 0.0
    %873 = vmatpush.msra.mxu0 0.0
    %874 = vmatpush.msra.mxu0 0.0
    %875 = vmatpush.msra.mxu0 0.0
    %876 = vmatpush.msra.mxu0 0.0
    %877 = vmatpush.msra.mxu0 0.0
    %878 = vmatpush.msra.mxu0 0.0
    %879 = vmatpush.msra.mxu0 0.0
    %880 = vmatpush.msra.mxu0 0.0
    %881 = vmatpush.msra.mxu0 0.0
    %882 = vmatpush.msra.mxu0 0.0
    %883 = vmatpush.msra.mxu0 0.0
    %884 = vmatpush.msra.mxu0 0.0
    %885 = vmatpush.msra.mxu0 %v869
    %886 = vmatpush.msra.mxu0 %v858
    %887 = vmatmul.f32.gmra.mxu0 %v866
    %v888 = vpop.f32.mrf.mxu0
    %v889 = vadd.f32 %v863, %v888
    %890 = vdwg.mxu0
    %v891 = vand.u32 2147483647, %v889
    %v892 = vsub.f32 0.0, %v891
    %v893 = vmul.f32 %v892, 1.442695
    %v894 = vpow.pop %v893
    %v895 = vadd.f32 %v894, 1.0
    %v896 = vrcp.pop %v895
    %v897 = vmul.f32 %v895, %v896
    %v898 = vsub.f32 1.0, %v897
    %v899 = vmul.f32 %v896, %v898
    %v900 = vadd.f32 %v896, %v899
    %vm901 = vweird.f32 %v895
    %vm902 = vweird.f32 %v896
    %vm903 = vmor %vm901, %vm902
    %v904 = vsel %vm903, %v896, %v900
    %v905 = vand.u32 2147483647, %v895
    %vm906 = vcmp.eq.f32.partialorder %v905, 8.507059e+37
    %v907 = vand.u32 %v895, 2147483648
    %v908 = vor.u32 1.1754944e-38, %v907
    %v909 = vsel %vm906, %v908, %v904
    %v910 = vmul.f32 1.0, %v909
    %vm911 = vcmp.ge.f32.partialorder %v889, 0.0
    %v912 = vmul.f32 %v894, %v910
    %v913 = vsel %vm911, %v910, %v912
    %v914 = vmul.f32 %v889, %v913
    %v915 = vadd.s32 %v229, 48
    %v916 = vadd.s32 %v229, 56
    %v917 = vadd.s32 %v229, 64
    %v918 = vadd.s32 %v229, 72
    %v919 = vadd.s32 %v229, 80
    %v920 = vadd.s32 %v229, 88
    %v921 = vadd.s32 %v233, 128
    %v922 = vmul.u32 %v915, 2
    %v923 = vmul.u32 %v916, 2
    %v924 = vmul.u32 %v917, 2
    %v925 = vmul.u32 %v918, 2
    %v926 = vmul.u32 %v919, 2
    %v927 = vmul.u32 %v920, 2
    %vm928 = vcmp.eq.s32.totalorder %v921, %v234
    %vm929 = vcmp.eq.s32.totalorder %v921, %v235
    %vm930 = vcmp.eq.s32.totalorder %v921, %v236
    %vm931 = vcmp.eq.s32.totalorder %v921, %v569
    %vm932 = vcmp.eq.s32.totalorder %v921, %v570
    %vm933 = vcmp.eq.s32.totalorder %v921, %v571
    %vm934 = vcmp.eq.s32.totalorder %v233, %v922
    %vm935 = vcmp.eq.s32.totalorder %v921, %v922
    %vm936 = vcmp.eq.s32.totalorder %v233, %v923
    %vm937 = vcmp.eq.s32.totalorder %v921, %v923
    %vm938 = vcmp.eq.s32.totalorder %v233, %v924
    %vm939 = vcmp.eq.s32.totalorder %v921, %v924
    %vm940 = vcmp.eq.s32.totalorder %v233, %v925
    %vm941 = vcmp.eq.s32.totalorder %v921, %v925
    %vm942 = vcmp.eq.s32.totalorder %v233, %v926
    %vm943 = vcmp.eq.s32.totalorder %v921, %v926
    %vm944 = vcmp.eq.s32.totalorder %v233, %v927
    %vm945 = vcmp.eq.s32.totalorder %v921, %v927
    %v946 = vsel %vm928, 1, 0
    %v947 = vsel %vm929, 1, 0
    %v948 = vsel %vm930, 1, 0
    %v949 = vsel %vm931, 1, 0
    %v950 = vsel %vm932, 1, 0
    %v951 = vsel %vm933, 1, 0
    %v952 = vsel %vm934, 1, 0
    %v953 = vsel %vm935, 1, 0
    %v954 = vsel %vm936, 1, 0
    %v955 = vsel %vm937, 1, 0
    %v956 = vsel %vm938, 1, 0
    %v957 = vsel %vm939, 1, 0
    %v958 = vsel %vm940, 1, 0
    %v959 = vsel %vm941, 1, 0
    %v960 = vsel %vm942, 1, 0
    %v961 = vsel %vm943, 1, 0
    %v962 = vsel %vm944, 1, 0
    %v963 = vsel %vm945, 1, 0
    %v964 = vcvt.s32.f32 %v946
    %v965 = vcvt.s32.f32 %v947
    %v966 = vcvt.s32.f32 %v948
    %v967 = vcvt.s32.f32 %v949
    %v968 = vcvt.s32.f32 %v950
    %v969 = vcvt.s32.f32 %v951
    %v970 = vcvt.s32.f32 %v952
    %v971 = vcvt.s32.f32 %v953
    %v972 = vcvt.s32.f32 %v954
    %v973 = vcvt.s32.f32 %v955
    %v974 = vcvt.s32.f32 %v956
    %v975 = vcvt.s32.f32 %v957
    %v976 = vcvt.s32.f32 %v958
    %v977 = vcvt.s32.f32 %v959
    %v978 = vcvt.s32.f32 %v960
    %v979 = vcvt.s32.f32 %v961
    %v980 = vcvt.s32.f32 %v962
    %v981 = vcvt.s32.f32 %v963
    %v982 = vadd.s32 %v922, 1
    %v983 = vadd.s32 %v923, 1
    %v984 = vadd.s32 %v924, 1
    %v985 = vadd.s32 %v925, 1
    %v986 = vadd.s32 %v926, 1
    %v987 = vadd.s32 %v927, 1
    %vm988 = vcmp.eq.s32.totalorder %v921, %v246
    %vm989 = vcmp.eq.s32.totalorder %v921, %v247
    %vm990 = vcmp.eq.s32.totalorder %v921, %v248
    %vm991 = vcmp.eq.s32.totalorder %v921, %v581
    %vm992 = vcmp.eq.s32.totalorder %v921, %v582
    %vm993 = vcmp.eq.s32.totalorder %v921, %v583
    %vm994 = vcmp.eq.s32.totalorder %v233, %v982
    %vm995 = vcmp.eq.s32.totalorder %v921, %v982
    %vm996 = vcmp.eq.s32.totalorder %v233, %v983
    %vm997 = vcmp.eq.s32.totalorder %v921, %v983
    %vm998 = vcmp.eq.s32.totalorder %v233, %v984
    %vm999 = vcmp.eq.s32.totalorder %v921, %v984
    %vm1000 = vcmp.eq.s32.totalorder %v233, %v985
    %vm1001 = vcmp.eq.s32.totalorder %v921, %v985
    %vm1002 = vcmp.eq.s32.totalorder %v233, %v986
    %vm1003 = vcmp.eq.s32.totalorder %v921, %v986
    %vm1004 = vcmp.eq.s32.totalorder %v233, %v987
    %vm1005 = vcmp.eq.s32.totalorder %v921, %v987
    %v1006 = vsel %vm988, 1, 0
    %v1007 = vsel %vm989, 1, 0
    %v1008 = vsel %vm990, 1, 0
    %v1009 = vsel %vm991, 1, 0
    %v1010 = vsel %vm992, 1, 0
    %v1011 = vsel %vm993, 1, 0
    %v1012 = vsel %vm994, 1, 0
    %v1013 = vsel %vm995, 1, 0
    %v1014 = vsel %vm996, 1, 0
    %v1015 = vsel %vm997, 1, 0
    %v1016 = vsel %vm998, 1, 0
    %v1017 = vsel %vm999, 1, 0
    %v1018 = vsel %vm1000, 1, 0
    %v1019 = vsel %vm1001, 1, 0
    %v1020 = vsel %vm1002, 1, 0
    %v1021 = vsel %vm1003, 1, 0
    %v1022 = vsel %vm1004, 1, 0
    %v1023 = vsel %vm1005, 1, 0
    %v1024 = vcvt.s32.f32 %v1006
    %v1025 = vcvt.s32.f32 %v1007
    %v1026 = vcvt.s32.f32 %v1008
    %v1027 = vcvt.s32.f32 %v1009
    %v1028 = vcvt.s32.f32 %v1010
    %v1029 = vcvt.s32.f32 %v1011
    %v1030 = vcvt.s32.f32 %v1012
    %v1031 = vcvt.s32.f32 %v1013
    %v1032 = vcvt.s32.f32 %v1014
    %v1033 = vcvt.s32.f32 %v1015
    %v1034 = vcvt.s32.f32 %v1016
    %v1035 = vcvt.s32.f32 %v1017
    %v1036 = vcvt.s32.f32 %v1018
    %v1037 = vcvt.s32.f32 %v1019
    %v1038 = vcvt.s32.f32 %v1020
    %v1039 = vcvt.s32.f32 %v1021
    %v1040 = vcvt.s32.f32 %v1022
    %v1041 = vcvt.s32.f32 %v1023
    %v1043 = vrot.slane %v914, 1
    %vm1044 = vcmask 752640
    %v1045 = vsel %vm1044, %v1043, 0
    %v1048 = vsel %vm102, %v1040, 0
    %v1051 = vsel %vm102, %v1041, 0
    %1053 = vmatpush.msra.mxu0 0.0
    %1054 = vmatpush.msra.mxu0 0.0
    %1055 = vmatpush.msra.mxu0 0.0
    %1056 = vmatpush.msra.mxu0 0.0
    %1057 = vmatpush.msra.mxu0 %v1048
    %1058 = vmatpush.msra.mxu0 %v1038
    %1059 = vmatpush.msra.mxu0 %v1036
    %1060 = vmatpush.msra.mxu0 %v1034
    %1061 = vmatpush.msra.mxu0 %v1032
    %1062 = vmatpush.msra.mxu0 %v1030
    %1063 = vmatpush.msra.mxu0 %v592
    %1064 = vmatpush.msra.mxu0 %v591
    %1065 = vmatpush.msra.mxu0 %v590
    %1066 = vmatpush.msra.mxu0 %v257
    %1067 = vmatpush.msra.mxu0 %v256
    %1068 = vmatpush.msra.mxu0 %v255
    %1069 = vmatmul.f32.gmra.mxu0 %v1045
    %v1070 = vpop.f32.mrf.mxu0
    %v1071 = vadd.f32 0.0, %v1070
    %1072 = vdwg.mxu0
    %1073 = vmatpush.msra.mxu0 0.0
    %1074 = vmatpush.msra.mxu0 0.0
    %1075 = vmatpush.msra.mxu0 0.0
    %1076 = vmatpush.msra.mxu0 0.0
    %1077 = vmatpush.msra.mxu0 %v1051
    %1078 = vmatpush.msra.mxu0 %v1039
    %1079 = vmatpush.msra.mxu0 %v1037
    %1080 = vmatpush.msra.mxu0 %v1035
    %1081 = vmatpush.msra.mxu0 %v1033
    %1082 = vmatpush.msra.mxu0 %v1031
    %1083 = vmatpush.msra.mxu0 %v1029
    %1084 = vmatpush.msra.mxu0 %v1028
    %1085 = vmatpush.msra.mxu0 %v1027
    %1086 = vmatpush.msra.mxu0 %v1026
    %1087 = vmatpush.msra.mxu0 %v1025
    %1088 = vmatpush.msra.mxu0 %v1024
    %1089 = vmatmul.f32.gmra.mxu0 %v1045
    %v1090 = vpop.f32.mrf.mxu0
    %v1091 = vadd.f32 0.0, %v1090
    %1092 = vdwg.mxu0
    %v1093 = vsel %vm1044, %v914, 0
    %v1096 = vsel %vm102, %v980, 0
    %v1099 = vsel %vm102, %v981, 0
    %1101 = vmatpush.msra.mxu0 0.0
    %1102 = vmatpush.msra.mxu0 0.0
    %1103 = vmatpush.msra.mxu0 0.0
    %1104 = vmatpush.msra.mxu0 0.0
    %1105 = vmatpush.msra.mxu0 %v1096
    %1106 = vmatpush.msra.mxu0 %v978
    %1107 = vmatpush.msra.mxu0 %v976
    %1108 = vmatpush.msra.mxu0 %v974
    %1109 = vmatpush.msra.mxu0 %v972
    %1110 = vmatpush.msra.mxu0 %v970
    %1111 = vmatpush.msra.mxu0 %v580
    %1112 = vmatpush.msra.mxu0 %v579
    %1113 = vmatpush.msra.mxu0 %v578
    %1114 = vmatpush.msra.mxu0 %v245
    %1115 = vmatpush.msra.mxu0 %v244
    %1116 = vmatpush.msra.mxu0 %v243
    %1117 = vmatmul.f32.gmra.mxu0 %v1093
    %v1118 = vpop.f32.mrf.mxu0
    %v1119 = vadd.f32 %v1071, %v1118
    %1120 = vdwg.mxu0
    %1121 = vmatpush.msra.mxu0 0.0
    %1122 = vmatpush.msra.mxu0 0.0
    %1123 = vmatpush.msra.mxu0 0.0
    %1124 = vmatpush.msra.mxu0 0.0
    %1125 = vmatpush.msra.mxu0 %v1099
    %1126 = vmatpush.msra.mxu0 %v979
    %1127 = vmatpush.msra.mxu0 %v977
    %1128 = vmatpush.msra.mxu0 %v975
    %1129 = vmatpush.msra.mxu0 %v973
    %1130 = vmatpush.msra.mxu0 %v971
    %1131 = vmatpush.msra.mxu0 %v969
    %1132 = vmatpush.msra.mxu0 %v968
    %1133 = vmatpush.msra.mxu0 %v967
    %1134 = vmatpush.msra.mxu0 %v966
    %1135 = vmatpush.msra.mxu0 %v965
    %1136 = vmatpush.msra.mxu0 %v964
    %1137 = vmatmul.f32.gmra.mxu0 %v1093
    %v1138 = vpop.f32.mrf.mxu0
    %v1139 = vadd.f32 %v1091, %v1138
    %1140 = vdwg.mxu0
    %vm1141 = vcmask 745472
    %1142 = vst.msk [vmem:[#allocation2] sm:$0x1] %vm1141, %v1119
    %1145 = vrot.lane.b32.xlu0 %v1119, 36
    %v1146 = vpop.permute.xlu0 %1145
    %1147 = vrot.lane.b32.xlu0 %v1139, 36
    %v1148 = vpop.permute.xlu0 %1147
    %v1149 = vsel %vm147, %v1146, %v1148
    %s1151 = scalar_lea.vmem [#allocation2], 1
    %1152 = vst.msk [vmem:[%s1151] sm:$0x1] %vm1141, %v1149
    // Predicated region
    $region62: #{de_cov_forward.1} parent=1 // pred_check
      _
    $region63: #{de_cov_forward.1} parent=1 // pred_check_branch
      %1154 = sbr.rel (0) target = $region65
    $region64: #{de_cov_forward.1} parent=1 // pred_region
      %1156 = vsyncadd [#allocation3], 0
      %s1157 = sshll.u32 [#allocation2], 4
      %s1158 = int_to_ptr.vmem [resolvable:$true] %s1157
      %s1159 = sshll.u32 %s15, 4
      %s1160 = int_to_ptr.hbm [resolvable:$true] %s1159
      %1165 = dma.vmem_to_hbm [thread:$0]  %s1158, 32, %s1160, [#allocation3], 16, 16, 1
    $region65: #{de_cov_forward.1} parent=1 // pred_fallthru
      _
    // Predicated region
    $region66: #{de_cov_forward.1} parent=1 // pred_check
      _
    $region67: #{de_cov_forward.1} parent=1 // pred_check_branch
      %1167 = sbr.rel (0) target = $region69
    $region68: #{de_cov_forward.1} parent=1 // pred_region
      %1169 = dma.done [#allocation3], 32
    $region69: #{de_cov_forward.1} parent=1 // pred_fallthru
      _
    %1170 = vsyncpa [#allocation3], 1

</llo_original>
